<compile_context>
chip_gen: v7x
topology: tpu7x:2x2x1
jax: 0.10.0
libtpu: 0.0.40
codegen_flags: <defaults>
</compile_context>

<pallas_src>
import jax
import jax.numpy as jnp
from jax.experimental import pallas as pl
from jax.experimental.pallas import tpu as pltpu

NUM_FEATURES = 32
H1, H2, H3, OUT = 512, 256, 128, 104
OUT_PAD = 128          # lane-dense padded output width
VEC_ROWS = 16          # packed bias / LN-param slab rows (>=10, 8-aligned)
LN_EPS = 1e-5


def _round_up(n, m):
    return ((n + m - 1) // m) * m


def _cdiv(a, b):
    return (a + b - 1) // b


def _layernorm(h, gamma, beta):
    """Single-pass LayerNorm: mu/var from sum and sum-of-squares.

    Safe here because tanh bounds |h| <= 1 and eps guards the rsqrt.
    """
    inv_n = 1.0 / h.shape[-1]
    s = jnp.sum(h, axis=-1, keepdims=True)
    ss = jnp.sum(h * h, axis=-1, keepdims=True)
    mu = s * inv_n
    var = ss * inv_n - mu * mu
    return (h - mu) * jax.lax.rsqrt(var + LN_EPS) * gamma + beta


def mlp_kernel(x_ref, w1_ref, w2_ref, w3_ref, wo_ref, vec_ref, o_ref):
    # Unpack the small-vector slab (static, aligned slices).
    b1  = vec_ref[0:1, :]
    g1  = vec_ref[1:2, :]
    be1 = vec_ref[2:3, :]
    b2  = vec_ref[3:4, :H2]
    g2  = vec_ref[4:5, :H2]
    be2 = vec_ref[5:6, :H2]
    b3  = vec_ref[6:7, :H3]
    g3  = vec_ref[7:8, :H3]
    be3 = vec_ref[8:9, :H3]
    bo  = vec_ref[9:10, :OUT_PAD]

    # layer_1 -> tanh -> norm_1  (x already bf16; bf16 MXU, f32 accumulation)
    h = jnp.dot(x_ref[...], w1_ref[...],
                preferred_element_type=jnp.float32) + b1
    h = _layernorm(jnp.tanh(h), g1, be1)

    # layer_2 -> tanh -> norm_2
    h = jnp.dot(h.astype(jnp.bfloat16), w2_ref[...],
                preferred_element_type=jnp.float32) + b2
    h = _layernorm(jnp.tanh(h), g2, be2)

    # layer_3 -> tanh -> norm_3
    h = jnp.dot(h.astype(jnp.bfloat16), w3_ref[...],
                preferred_element_type=jnp.float32) + b3
    h = _layernorm(jnp.tanh(h), g3, be3)

    # layer_out (no activation); padded to 128 lanes
    y = jnp.dot(h.astype(jnp.bfloat16), wo_ref[...],
                preferred_element_type=jnp.float32) + bo
    o_ref[...] = y.astype(o_ref.dtype)


def _choose_tiling(batch, tile_m):
    """Pick (tile_rows, num_tiles).

    Aims for big tiles (amortize ~0.35us/grid-step) while keeping the grid
    length >= 2 and even once there is enough work, so the "parallel" batch
    axis can shard across both TensorCores on v7x.
    """
    rows8 = _round_up(batch, 8)
    tm = min(tile_m, rows8)
    num_tiles = _cdiv(rows8, tm)
    if num_tiles == 1 and rows8 >= 512:
        # Enough work to split across 2 TCs: two equal 8-aligned tiles.
        tm = _round_up(_cdiv(rows8, 2), 8)
        num_tiles = 2
    elif num_tiles > 1 and num_tiles % 2:
        num_tiles += 1          # even grid for balanced dual-TC sharding
    return tm, num_tiles


def pytorch_multiclass_forward_padded(x, params, tile_m=512):
    """Fused forward pass. Returns the kernel-native (rows_padded, 128) f32
    output. Rows beyond x.shape[0] and lanes beyond OUT are padding; slice
    lazily in the consumer to avoid an extra HBM copy pass.

    tile_m: batch-tile rows. 512 is a good default on all generations
    (512-1024 reaches ~85% of the HBM roofline; v5e's 16 MiB scoped-VMEM
    default is lifted explicitly below).
    """
    w1, w2, w3, wo, vec = params

    if x.dtype != jnp.bfloat16:
        # Prefer handing bf16 activations to this function; this cast is an
        # extra (un-hidden) HBM pass.
        x = x.astype(jnp.bfloat16)

    batch = x.shape[0]
    tm, num_tiles = _choose_tiling(batch, tile_m)
    padded = tm * num_tiles
    if padded != batch:
        # Tiny: only the 32-wide bf16 input is padded (64 B/row).
        x = jnp.pad(x, ((0, padded - batch), (0, 0)))

    def build(single_buffer_weights):
        def wspec(shape):
            # Constant index_map -> weights are DMA'd once and stay resident;
            # single-buffer them to drop the dead second pipeline buffer.
            if single_buffer_weights:
                return pl.BlockSpec(shape, lambda i: (0, 0),
                                    pipeline_mode=pl.Buffered(1))
            return pl.BlockSpec(shape, lambda i: (0, 0))

        return pl.pallas_call(
            mlp_kernel,
            out_shape=jax.ShapeDtypeStruct((padded, OUT_PAD), jnp.float32),
            grid_spec=pltpu.PrefetchScalarGridSpec(
                num_scalar_prefetch=0,
                grid=(num_tiles,),
                in_specs=[
                    # activations: tiled over batch, double-buffered by Pallas
                    pl.BlockSpec((tm, NUM_FEATURES), lambda i: (i, 0)),
                    # resident bf16 weights + packed bias/LN slab
                    wspec((NUM_FEATURES, H1)),
                    wspec((H1, H2)),
                    wspec((H2, H3)),
                    wspec((H3, OUT_PAD)),
                    wspec((VEC_ROWS, H1)),
                ],
                out_specs=pl.BlockSpec((tm, OUT_PAD), lambda i: (i, 0)),
            ),
            compiler_params=pltpu.CompilerParams(
                dimension_semantics=("parallel",),   # v7x: shard batch on 2 TCs
                vmem_limit_bytes=32 * 1024 * 1024),  # lift v5e's 16 MiB default
        )

    try:
        return build(True)(x, w1, w2, w3, wo, vec)
    except Exception:
        # pl.Buffered(1) unsupported on this jax version -> default buffering.
        return build(False)(x, w1, w2, w3, wo, vec)


def pytorch_multiclass_forward(x, params, tile_m=512):
    """PyTorch-shaped (batch, 104) convenience wrapper. Performance-sensitive
    consumers should call pytorch_multiclass_forward_padded and slice lazily."""
    out = pytorch_multiclass_forward_padded(x, params, tile_m)
    return out[:x.shape[0], :OUT]


def init_params(key):
    """Deterministic init mirroring nn.Linear / nn.LayerNorm.

    Returns (w1, w2, w3, wo_padded) in bf16 with layout (in_dim, out_dim),
    plus one packed f32 slab (VEC_ROWS, 512) holding:
      row 0..2 : b1, gamma1, beta1   (width 512)
      row 3..5 : b2, gamma2, beta2   (width 256, zero padded)
      row 6..8 : b3, gamma3, beta3   (width 128, zero padded)
      row 9    : b_out               (width 104, zero padded to 128/512)
    """
    dims = [(NUM_FEATURES, H1), (H1, H2), (H2, H3), (H3, OUT)]
    keys = jax.random.split(key, 2 * len(dims))
    ws, bs = [], []
    for i, (din, dout) in enumerate(dims):
        bound = din ** -0.5
        ws.append(jax.random.uniform(keys[2 * i], (din, dout),
                                     jnp.float32, -bound, bound))
        bs.append(jax.random.uniform(keys[2 * i + 1], (dout,),
                                     jnp.float32, -bound, bound))
    w1, w2, w3, wo = ws
    b1, b2, b3, bo = bs

    # Pad the output projection 104 -> 128 lanes with zeros.
    wo_p = jnp.zeros((H3, OUT_PAD), jnp.float32).at[:, :OUT].set(wo)
    bo_p = jnp.zeros((OUT_PAD,), jnp.float32).at[:OUT].set(bo)

    vec = jnp.zeros((VEC_ROWS, H1), jnp.float32)
    vec = vec.at[0, :H1].set(b1)
    vec = vec.at[1, :H1].set(jnp.ones((H1,), jnp.float32))   # gamma1
    # row 2 (beta1) stays zero
    vec = vec.at[3, :H2].set(b2)
    vec = vec.at[4, :H2].set(jnp.ones((H2,), jnp.float32))   # gamma2
    # row 5 (beta2) stays zero
    vec = vec.at[6, :H3].set(b3)
    vec = vec.at[7, :H3].set(jnp.ones((H3,), jnp.float32))   # gamma3
    # row 8 (beta3) stays zero
    vec = vec.at[9, :OUT_PAD].set(bo_p)

    return (w1.astype(jnp.bfloat16), w2.astype(jnp.bfloat16),
            w3.astype(jnp.bfloat16), wo_p.astype(jnp.bfloat16), vec)


def reference_forward(x, params):
    """Pure-JAX reference mirroring the kernel's math (bf16 dot inputs)."""
    w1, w2, w3, wo, vec = params
    b1, g1, be1 = vec[0:1, :], vec[1:2, :], vec[2:3, :]
    b2, g2, be2 = vec[3:4, :H2], vec[4:5, :H2], vec[5:6, :H2]
    b3, g3, be3 = vec[6:7, :H3], vec[7:8, :H3], vec[8:9, :H3]
    bo = vec[9:10, :OUT_PAD]

    def ln(h, g, b):
        mu = jnp.mean(h, axis=-1, keepdims=True)
        var = jnp.mean((h - mu) ** 2, axis=-1, keepdims=True)
        return (h - mu) * jax.lax.rsqrt(var + LN_EPS) * g + b

    h = jnp.dot(x.astype(jnp.bfloat16), w1,
                preferred_element_type=jnp.float32) + b1
    h = ln(jnp.tanh(h), g1, be1)
    h = jnp.dot(h.astype(jnp.bfloat16), w2,
                preferred_element_type=jnp.float32) + b2
    h = ln(jnp.tanh(h), g2, be2)
    h = jnp.dot(h.astype(jnp.bfloat16), w3,
                preferred_element_type=jnp.float32) + b3
    h = ln(jnp.tanh(h), g3, be3)
    y = jnp.dot(h.astype(jnp.bfloat16), wo,
                preferred_element_type=jnp.float32) + bo
    return y[:, :OUT]


if __name__ == "__main__":
    key = jax.random.PRNGKey(0)
    k_x, k_p, k_x2 = jax.random.split(key, 3)
    params = init_params(k_p)

    # --- small shape (single tile) ------------------------------------------
    batch = 8
    x = jax.random.normal(k_x, (batch, NUM_FEATURES), jnp.float32)
    x_bf16 = x.astype(jnp.bfloat16)          # bf16 at the API boundary

    out_padded = jax.block_until_ready(
        pytorch_multiclass_forward_padded(x_bf16, params))
    out = out_padded[:batch, :OUT]           # lazy consumer-side slice
    ref = reference_forward(x_bf16, params)

    assert out_padded.shape == (batch, OUT_PAD)
    assert out.shape == (batch, OUT)
    assert jnp.allclose(out, ref, atol=5e-3, rtol=5e-3), "mismatch (batch=8)"

    # --- moderately larger batch: exercises the multi-tile, even-grid path ---
    batch2 = 640
    x2 = jax.random.normal(k_x2, (batch2, NUM_FEATURES),
                           jnp.float32).astype(jnp.bfloat16)
    out2_padded = jax.block_until_ready(
        pytorch_multiclass_forward_padded(x2, params))
    out2 = out2_padded[:batch2, :OUT]
    ref2 = reference_forward(x2, params)

    assert out2.shape == (batch2, OUT)
    assert jnp.allclose(out2, ref2, atol=5e-3, rtol=5e-3), "mismatch (batch=640)"

    print("KERNEL_OK")
</pallas_src>

<mosaic_0001>
module attributes {stable_mosaic.version = 11 : i64} {
  func.func @mlp_kernel(%arg0: i32, %arg1: memref<8x32xbf16, #tpu.memory_space<vmem>>, %arg2: memref<32x512xbf16, #tpu.memory_space<vmem>>, %arg3: memref<512x256xbf16, #tpu.memory_space<vmem>>, %arg4: memref<256x128xbf16, #tpu.memory_space<vmem>>, %arg5: memref<128x128xbf16, #tpu.memory_space<vmem>>, %arg6: memref<16x512xf32, #tpu.memory_space<vmem>>, %arg7: memref<8x128xf32, #tpu.memory_space<vmem>>) attributes {dimension_semantics = [#tpu.dimension_semantics<parallel>], iteration_bounds = array<i64: 1>, scalar_prefetch = 0 : i64, scratch_operands = 0 : i64, tpu.core_type = #tpu.core_type<tc>, window_params = [{transform_indices = @transform_0, window_bounds = array<i64: 8, 32>}, {pipeline_mode = #tpu.pipeline_mode<synchronous>, transform_indices = @transform_1, window_bounds = array<i64: 32, 512>}, {pipeline_mode = #tpu.pipeline_mode<synchronous>, transform_indices = @transform_2, window_bounds = array<i64: 512, 256>}, {pipeline_mode = #tpu.pipeline_mode<synchronous>, transform_indices = @transform_3, window_bounds = array<i64: 256, 128>}, {pipeline_mode = #tpu.pipeline_mode<synchronous>, transform_indices = @transform_4, window_bounds = array<i64: 128, 128>}, {pipeline_mode = #tpu.pipeline_mode<synchronous>, transform_indices = @transform_5, window_bounds = array<i64: 16, 512>}, {transform_indices = @transform_6, window_bounds = array<i64: 8, 128>}]} {
    %c0 = arith.constant 0 : index
    %c0_0 = arith.constant 0 : index
    %0 = vector.load %arg6[%c0, %c0_0] : memref<16x512xf32, #tpu.memory_space<vmem>>, vector<1x512xf32>
    %c1 = arith.constant 1 : index
    %c0_1 = arith.constant 0 : index
    %1 = vector.load %arg6[%c1, %c0_1] : memref<16x512xf32, #tpu.memory_space<vmem>>, vector<1x512xf32>
    %c2 = arith.constant 2 : index
    %c0_2 = arith.constant 0 : index
    %2 = vector.load %arg6[%c2, %c0_2] : memref<16x512xf32, #tpu.memory_space<vmem>>, vector<1x512xf32>
    %c3 = arith.constant 3 : index
    %c0_3 = arith.constant 0 : index
    %3 = vector.load %arg6[%c3, %c0_3] : memref<16x512xf32, #tpu.memory_space<vmem>>, vector<1x256xf32>
    %c4 = arith.constant 4 : index
    %c0_4 = arith.constant 0 : index
    %4 = vector.load %arg6[%c4, %c0_4] : memref<16x512xf32, #tpu.memory_space<vmem>>, vector<1x256xf32>
    %c5 = arith.constant 5 : index
    %c0_5 = arith.constant 0 : index
    %5 = vector.load %arg6[%c5, %c0_5] : memref<16x512xf32, #tpu.memory_space<vmem>>, vector<1x256xf32>
    %c6 = arith.constant 6 : index
    %c0_6 = arith.constant 0 : index
    %6 = vector.load %arg6[%c6, %c0_6] : memref<16x512xf32, #tpu.memory_space<vmem>>, vector<1x128xf32>
    %c7 = arith.constant 7 : index
    %c0_7 = arith.constant 0 : index
    %7 = vector.load %arg6[%c7, %c0_7] : memref<16x512xf32, #tpu.memory_space<vmem>>, vector<1x128xf32>
    %c8 = arith.constant 8 : index
    %c0_8 = arith.constant 0 : index
    %8 = vector.load %arg6[%c8, %c0_8] : memref<16x512xf32, #tpu.memory_space<vmem>>, vector<1x128xf32>
    %c9 = arith.constant 9 : index
    %c0_9 = arith.constant 0 : index
    %9 = vector.load %arg6[%c9, %c0_9] : memref<16x512xf32, #tpu.memory_space<vmem>>, vector<1x128xf32>
    %c0_10 = arith.constant 0 : index
    %c0_11 = arith.constant 0 : index
    %10 = vector.load %arg1[%c0_10, %c0_11] : memref<8x32xbf16, #tpu.memory_space<vmem>>, vector<8x32xbf16>
    %c0_12 = arith.constant 0 : index
    %c0_13 = arith.constant 0 : index
    %11 = vector.load %arg2[%c0_12, %c0_13] : memref<32x512xbf16, #tpu.memory_space<vmem>>, vector<32x512xbf16>
    %cst = arith.constant dense<0.000000e+00> : vector<8x512xf32>
    %12 = tpu.matmul %10, %11, %cst {dimension_numbers = #tpu.dot_dimension_numbers<[1], [0], [0], [1], [0, 0, 1, 1], [], []>} : vector<8x32xbf16>, vector<32x512xbf16>, vector<8x512xf32> -> vector<8x512xf32>
    %13 = vector.broadcast %0 : vector<1x512xf32> to vector<8x512xf32>
    %14 = arith.addf %12, %13 : vector<8x512xf32>
    %15 = math.tanh %14 : vector<8x512xf32>
    %cst_14 = arith.constant dense<0.000000e+00> : vector<8xf32>
    %16 = vector.multi_reduction <add>, %15, %cst_14 [1] : vector<8x512xf32> to vector<8xf32>
    %17 = vector.shape_cast %16 : vector<8xf32> to vector<8x1xf32>
    %18 = arith.mulf %15, %15 : vector<8x512xf32>
    %cst_15 = arith.constant dense<0.000000e+00> : vector<8xf32>
    %19 = vector.multi_reduction <add>, %18, %cst_15 [1] : vector<8x512xf32> to vector<8xf32>
    %20 = vector.shape_cast %19 : vector<8xf32> to vector<8x1xf32>
    %cst_16 = arith.constant 0.001953125 : f32
    %21 = vector.broadcast %cst_16 : f32 to vector<8x1xf32>
    %22 = arith.mulf %17, %21 : vector<8x1xf32>
    %cst_17 = arith.constant 0.001953125 : f32
    %23 = vector.broadcast %cst_17 : f32 to vector<8x1xf32>
    %24 = arith.mulf %20, %23 : vector<8x1xf32>
    %25 = arith.mulf %22, %22 : vector<8x1xf32>
    %26 = arith.subf %24, %25 : vector<8x1xf32>
    %27 = vector.broadcast %22 : vector<8x1xf32> to vector<8x512xf32>
    %28 = arith.subf %15, %27 : vector<8x512xf32>
    %cst_18 = arith.constant 9.99999974E-6 : f32
    %29 = vector.broadcast %cst_18 : f32 to vector<8x1xf32>
    %30 = arith.addf %26, %29 : vector<8x1xf32>
    %31 = math.rsqrt %30 : vector<8x1xf32>
    %32 = vector.broadcast %31 : vector<8x1xf32> to vector<8x512xf32>
    %33 = arith.mulf %28, %32 : vector<8x512xf32>
    %34 = vector.broadcast %1 : vector<1x512xf32> to vector<8x512xf32>
    %35 = arith.mulf %33, %34 : vector<8x512xf32>
    %36 = vector.broadcast %2 : vector<1x512xf32> to vector<8x512xf32>
    %37 = arith.addf %35, %36 : vector<8x512xf32>
    %38 = arith.truncf %37 : vector<8x512xf32> to vector<8x512xbf16>
    %c0_19 = arith.constant 0 : index
    %c0_20 = arith.constant 0 : index
    %39 = vector.load %arg3[%c0_19, %c0_20] : memref<512x256xbf16, #tpu.memory_space<vmem>>, vector<512x256xbf16>
    %cst_21 = arith.constant dense<0.000000e+00> : vector<8x256xf32>
    %40 = tpu.matmul %38, %39, %cst_21 {dimension_numbers = #tpu.dot_dimension_numbers<[1], [0], [0], [1], [0, 0, 1, 1], [], []>} : vector<8x512xbf16>, vector<512x256xbf16>, vector<8x256xf32> -> vector<8x256xf32>
    %41 = vector.broadcast %3 : vector<1x256xf32> to vector<8x256xf32>
    %42 = arith.addf %40, %41 : vector<8x256xf32>
    %43 = math.tanh %42 : vector<8x256xf32>
    %cst_22 = arith.constant dense<0.000000e+00> : vector<8xf32>
    %44 = vector.multi_reduction <add>, %43, %cst_22 [1] : vector<8x256xf32> to vector<8xf32>
    %45 = vector.shape_cast %44 : vector<8xf32> to vector<8x1xf32>
    %46 = arith.mulf %43, %43 : vector<8x256xf32>
    %cst_23 = arith.constant dense<0.000000e+00> : vector<8xf32>
    %47 = vector.multi_reduction <add>, %46, %cst_23 [1] : vector<8x256xf32> to vector<8xf32>
    %48 = vector.shape_cast %47 : vector<8xf32> to vector<8x1xf32>
    %cst_24 = arith.constant 3.906250e-03 : f32
    %49 = vector.broadcast %cst_24 : f32 to vector<8x1xf32>
    %50 = arith.mulf %45, %49 : vector<8x1xf32>
    %cst_25 = arith.constant 3.906250e-03 : f32
    %51 = vector.broadcast %cst_25 : f32 to vector<8x1xf32>
    %52 = arith.mulf %48, %51 : vector<8x1xf32>
    %53 = arith.mulf %50, %50 : vector<8x1xf32>
    %54 = arith.subf %52, %53 : vector<8x1xf32>
    %55 = vector.broadcast %50 : vector<8x1xf32> to vector<8x256xf32>
    %56 = arith.subf %43, %55 : vector<8x256xf32>
    %cst_26 = arith.constant 9.99999974E-6 : f32
    %57 = vector.broadcast %cst_26 : f32 to vector<8x1xf32>
    %58 = arith.addf %54, %57 : vector<8x1xf32>
    %59 = math.rsqrt %58 : vector<8x1xf32>
    %60 = vector.broadcast %59 : vector<8x1xf32> to vector<8x256xf32>
    %61 = arith.mulf %56, %60 : vector<8x256xf32>
    %62 = vector.broadcast %4 : vector<1x256xf32> to vector<8x256xf32>
    %63 = arith.mulf %61, %62 : vector<8x256xf32>
    %64 = vector.broadcast %5 : vector<1x256xf32> to vector<8x256xf32>
    %65 = arith.addf %63, %64 : vector<8x256xf32>
    %66 = arith.truncf %65 : vector<8x256xf32> to vector<8x256xbf16>
    %c0_27 = arith.constant 0 : index
    %c0_28 = arith.constant 0 : index
    %67 = vector.load %arg4[%c0_27, %c0_28] : memref<256x128xbf16, #tpu.memory_space<vmem>>, vector<256x128xbf16>
    %cst_29 = arith.constant dense<0.000000e+00> : vector<8x128xf32>
    %68 = tpu.matmul %66, %67, %cst_29 {dimension_numbers = #tpu.dot_dimension_numbers<[1], [0], [0], [1], [0, 0, 1, 1], [], []>} : vector<8x256xbf16>, vector<256x128xbf16>, vector<8x128xf32> -> vector<8x128xf32>
    %69 = vector.broadcast %6 : vector<1x128xf32> to vector<8x128xf32>
    %70 = arith.addf %68, %69 : vector<8x128xf32>
    %71 = math.tanh %70 : vector<8x128xf32>
    %cst_30 = arith.constant dense<0.000000e+00> : vector<8xf32>
    %72 = vector.multi_reduction <add>, %71, %cst_30 [1] : vector<8x128xf32> to vector<8xf32>
    %73 = vector.shape_cast %72 : vector<8xf32> to vector<8x1xf32>
    %74 = arith.mulf %71, %71 : vector<8x128xf32>
    %cst_31 = arith.constant dense<0.000000e+00> : vector<8xf32>
    %75 = vector.multi_reduction <add>, %74, %cst_31 [1] : vector<8x128xf32> to vector<8xf32>
    %76 = vector.shape_cast %75 : vector<8xf32> to vector<8x1xf32>
    %cst_32 = arith.constant 7.812500e-03 : f32
    %77 = vector.broadcast %cst_32 : f32 to vector<8x1xf32>
    %78 = arith.mulf %73, %77 : vector<8x1xf32>
    %cst_33 = arith.constant 7.812500e-03 : f32
    %79 = vector.broadcast %cst_33 : f32 to vector<8x1xf32>
    %80 = arith.mulf %76, %79 : vector<8x1xf32>
    %81 = arith.mulf %78, %78 : vector<8x1xf32>
    %82 = arith.subf %80, %81 : vector<8x1xf32>
    %83 = vector.broadcast %78 : vector<8x1xf32> to vector<8x128xf32>
    %84 = arith.subf %71, %83 : vector<8x128xf32>
    %cst_34 = arith.constant 9.99999974E-6 : f32
    %85 = vector.broadcast %cst_34 : f32 to vector<8x1xf32>
    %86 = arith.addf %82, %85 : vector<8x1xf32>
    %87 = math.rsqrt %86 : vector<8x1xf32>
    %88 = vector.broadcast %87 : vector<8x1xf32> to vector<8x128xf32>
    %89 = arith.mulf %84, %88 : vector<8x128xf32>
    %90 = vector.broadcast %7 : vector<1x128xf32> to vector<8x128xf32>
    %91 = arith.mulf %89, %90 : vector<8x128xf32>
    %92 = vector.broadcast %8 : vector<1x128xf32> to vector<8x128xf32>
    %93 = arith.addf %91, %92 : vector<8x128xf32>
    %94 = arith.truncf %93 : vector<8x128xf32> to vector<8x128xbf16>
    %c0_35 = arith.constant 0 : index
    %c0_36 = arith.constant 0 : index
    %95 = vector.load %arg5[%c0_35, %c0_36] : memref<128x128xbf16, #tpu.memory_space<vmem>>, vector<128x128xbf16>
    %cst_37 = arith.constant dense<0.000000e+00> : vector<8x128xf32>
    %96 = tpu.matmul %94, %95, %cst_37 {dimension_numbers = #tpu.dot_dimension_numbers<[1], [0], [0], [1], [0, 0, 1, 1], [], []>} : vector<8x128xbf16>, vector<128x128xbf16>, vector<8x128xf32> -> vector<8x128xf32>
    %97 = vector.broadcast %9 : vector<1x128xf32> to vector<8x128xf32>
    %98 = arith.addf %96, %97 : vector<8x128xf32>
    %c0_38 = arith.constant 0 : index
    %c0_39 = arith.constant 0 : index
    %99 = vector.load %arg7[%c0_38, %c0_39] : memref<8x128xf32, #tpu.memory_space<vmem>>, vector<8x128xf32>
    tpu.vector_store %arg7[%c0_38, %c0_39], %98 {strides = array<i32>} : memref<8x128xf32, #tpu.memory_space<vmem>>, vector<8x128xf32>,
    return
  }
  func.func @transform_0(%arg0: i32) -> (i32, i32) {
    %c0_i32 = arith.constant 0 : i32
    %c0_i32_0 = arith.constant 0 : i32
    return %arg0, %c0_i32 : i32, i32
  }
  func.func @transform_1(%arg0: i32) -> (i32, i32) {
    %c0_i32 = arith.constant 0 : i32
    %c0_i32_0 = arith.constant 0 : i32
    %c0_i32_1 = arith.constant 0 : i32
    return %c0_i32, %c0_i32_0 : i32, i32
  }
  func.func @transform_2(%arg0: i32) -> (i32, i32) {
    %c0_i32 = arith.constant 0 : i32
    %c0_i32_0 = arith.constant 0 : i32
    %c0_i32_1 = arith.constant 0 : i32
    return %c0_i32, %c0_i32_0 : i32, i32
  }
  func.func @transform_3(%arg0: i32) -> (i32, i32) {
    %c0_i32 = arith.constant 0 : i32
    %c0_i32_0 = arith.constant 0 : i32
    %c0_i32_1 = arith.constant 0 : i32
    return %c0_i32, %c0_i32_0 : i32, i32
  }
  func.func @transform_4(%arg0: i32) -> (i32, i32) {
    %c0_i32 = arith.constant 0 : i32
    %c0_i32_0 = arith.constant 0 : i32
    %c0_i32_1 = arith.constant 0 : i32
    return %c0_i32, %c0_i32_0 : i32, i32
  }
  func.func @transform_5(%arg0: i32) -> (i32, i32) {
    %c0_i32 = arith.constant 0 : i32
    %c0_i32_0 = arith.constant 0 : i32
    %c0_i32_1 = arith.constant 0 : i32
    return %c0_i32, %c0_i32_0 : i32, i32
  }
  func.func @transform_6(%arg0: i32) -> (i32, i32) {
    %c0_i32 = arith.constant 0 : i32
    %c0_i32_0 = arith.constant 0 : i32
    return %arg0, %c0_i32 : i32, i32
  }
}

module attributes {stable_mosaic.version = 11 : i64} {
  func.func @mlp_kernel(%arg0: i32, %arg1: memref<8x32xbf16, #tpu.memory_space<vmem>>, %arg2: memref<32x512xbf16, #tpu.memory_space<vmem>>, %arg3: memref<512x256xbf16, #tpu.memory_space<vmem>>, %arg4: memref<256x128xbf16, #tpu.memory_space<vmem>>, %arg5: memref<128x128xbf16, #tpu.memory_space<vmem>>, %arg6: memref<16x512xf32, #tpu.memory_space<vmem>>, %arg7: memref<8x128xf32, #tpu.memory_space<vmem>>) attributes {dimension_semantics = [#tpu.dimension_semantics<parallel>], iteration_bounds = array<i64: 1>, scalar_prefetch = 0 : i64, scratch_operands = 0 : i64, tpu.core_type = #tpu.core_type<tc>, window_params = [{transform_indices = @transform_0, window_bounds = array<i64: 8, 32>}, {pipeline_mode = #tpu.pipeline_mode<synchronous>, transform_indices = @transform_1, window_bounds = array<i64: 32, 512>}, {pipeline_mode = #tpu.pipeline_mode<synchronous>, transform_indices = @transform_2, window_bounds = array<i64: 512, 256>}, {pipeline_mode = #tpu.pipeline_mode<synchronous>, transform_indices = @transform_3, window_bounds = array<i64: 256, 128>}, {pipeline_mode = #tpu.pipeline_mode<synchronous>, transform_indices = @transform_4, window_bounds = array<i64: 128, 128>}, {pipeline_mode = #tpu.pipeline_mode<synchronous>, transform_indices = @transform_5, window_bounds = array<i64: 16, 512>}, {transform_indices = @transform_6, window_bounds = array<i64: 8, 128>}]} {
    %c0 = arith.constant 0 : index
    %c0_0 = arith.constant 0 : index
    %0 = vector.load %arg6[%c0, %c0_0] : memref<16x512xf32, #tpu.memory_space<vmem>>, vector<1x512xf32>
    %c1 = arith.constant 1 : index
    %c0_1 = arith.constant 0 : index
    %1 = vector.load %arg6[%c1, %c0_1] : memref<16x512xf32, #tpu.memory_space<vmem>>, vector<1x512xf32>
    %c2 = arith.constant 2 : index
    %c0_2 = arith.constant 0 : index
    %2 = vector.load %arg6[%c2, %c0_2] : memref<16x512xf32, #tpu.memory_space<vmem>>, vector<1x512xf32>
    %c3 = arith.constant 3 : index
    %c0_3 = arith.constant 0 : index
    %3 = vector.load %arg6[%c3, %c0_3] : memref<16x512xf32, #tpu.memory_space<vmem>>, vector<1x256xf32>
    %c4 = arith.constant 4 : index
    %c0_4 = arith.constant 0 : index
    %4 = vector.load %arg6[%c4, %c0_4] : memref<16x512xf32, #tpu.memory_space<vmem>>, vector<1x256xf32>
    %c5 = arith.constant 5 : index
    %c0_5 = arith.constant 0 : index
    %5 = vector.load %arg6[%c5, %c0_5] : memref<16x512xf32, #tpu.memory_space<vmem>>, vector<1x256xf32>
    %c6 = arith.constant 6 : index
    %c0_6 = arith.constant 0 : index
    %6 = vector.load %arg6[%c6, %c0_6] : memref<16x512xf32, #tpu.memory_space<vmem>>, vector<1x128xf32>
    %c7 = arith.constant 7 : index
    %c0_7 = arith.constant 0 : index
    %7 = vector.load %arg6[%c7, %c0_7] : memref<16x512xf32, #tpu.memory_space<vmem>>, vector<1x128xf32>
    %c8 = arith.constant 8 : index
    %c0_8 = arith.constant 0 : index
    %8 = vector.load %arg6[%c8, %c0_8] : memref<16x512xf32, #tpu.memory_space<vmem>>, vector<1x128xf32>
    %c9 = arith.constant 9 : index
    %c0_9 = arith.constant 0 : index
    %9 = vector.load %arg6[%c9, %c0_9] : memref<16x512xf32, #tpu.memory_space<vmem>>, vector<1x128xf32>
    %c0_10 = arith.constant 0 : index
    %c0_11 = arith.constant 0 : index
    %10 = vector.load %arg1[%c0_10, %c0_11] : memref<8x32xbf16, #tpu.memory_space<vmem>>, vector<8x32xbf16>
    %c0_12 = arith.constant 0 : index
    %c0_13 = arith.constant 0 : index
    %11 = vector.load %arg2[%c0_12, %c0_13] : memref<32x512xbf16, #tpu.memory_space<vmem>>, vector<32x512xbf16>
    %cst = arith.constant dense<0.000000e+00> : vector<8x512xf32>
    %12 = tpu.matmul %10, %11, %cst {dimension_numbers = #tpu.dot_dimension_numbers<[1], [0], [0], [1], [0, 0, 1, 1], [], []>} : vector<8x32xbf16>, vector<32x512xbf16>, vector<8x512xf32> -> vector<8x512xf32>
    %13 = vector.broadcast %0 : vector<1x512xf32> to vector<8x512xf32>
    %14 = arith.addf %12, %13 : vector<8x512xf32>
    %15 = math.tanh %14 : vector<8x512xf32>
    %cst_14 = arith.constant dense<0.000000e+00> : vector<8xf32>
    %16 = vector.multi_reduction <add>, %15, %cst_14 [1] : vector<8x512xf32> to vector<8xf32>
    %17 = vector.shape_cast %16 : vector<8xf32> to vector<8x1xf32>
    %18 = arith.mulf %15, %15 : vector<8x512xf32>
    %cst_15 = arith.constant dense<0.000000e+00> : vector<8xf32>
    %19 = vector.multi_reduction <add>, %18, %cst_15 [1] : vector<8x512xf32> to vector<8xf32>
    %20 = vector.shape_cast %19 : vector<8xf32> to vector<8x1xf32>
    %cst_16 = arith.constant 0.001953125 : f32
    %21 = vector.broadcast %cst_16 : f32 to vector<8x1xf32>
    %22 = arith.mulf %17, %21 : vector<8x1xf32>
    %cst_17 = arith.constant 0.001953125 : f32
    %23 = vector.broadcast %cst_17 : f32 to vector<8x1xf32>
    %24 = arith.mulf %20, %23 : vector<8x1xf32>
    %25 = arith.mulf %22, %22 : vector<8x1xf32>
    %26 = arith.subf %24, %25 : vector<8x1xf32>
    %27 = vector.broadcast %22 : vector<8x1xf32> to vector<8x512xf32>
    %28 = arith.subf %15, %27 : vector<8x512xf32>
    %cst_18 = arith.constant 9.99999974E-6 : f32
    %29 = vector.broadcast %cst_18 : f32 to vector<8x1xf32>
    %30 = arith.addf %26, %29 : vector<8x1xf32>
    %31 = math.rsqrt %30 : vector<8x1xf32>
    %32 = vector.broadcast %31 : vector<8x1xf32> to vector<8x512xf32>
    %33 = arith.mulf %28, %32 : vector<8x512xf32>
    %34 = vector.broadcast %1 : vector<1x512xf32> to vector<8x512xf32>
    %35 = arith.mulf %33, %34 : vector<8x512xf32>
    %36 = vector.broadcast %2 : vector<1x512xf32> to vector<8x512xf32>
    %37 = arith.addf %35, %36 : vector<8x512xf32>
    %38 = arith.truncf %37 : vector<8x512xf32> to vector<8x512xbf16>
    %c0_19 = arith.constant 0 : index
    %c0_20 = arith.constant 0 : index
    %39 = vector.load %arg3[%c0_19, %c0_20] : memref<512x256xbf16, #tpu.memory_space<vmem>>, vector<512x256xbf16>
    %cst_21 = arith.constant dense<0.000000e+00> : vector<8x256xf32>
    %40 = tpu.matmul %38, %39, %cst_21 {dimension_numbers = #tpu.dot_dimension_numbers<[1], [0], [0], [1], [0, 0, 1, 1], [], []>} : vector<8x512xbf16>, vector<512x256xbf16>, vector<8x256xf32> -> vector<8x256xf32>
    %41 = vector.broadcast %3 : vector<1x256xf32> to vector<8x256xf32>
    %42 = arith.addf %40, %41 : vector<8x256xf32>
    %43 = math.tanh %42 : vector<8x256xf32>
    %cst_22 = arith.constant dense<0.000000e+00> : vector<8xf32>
    %44 = vector.multi_reduction <add>, %43, %cst_22 [1] : vector<8x256xf32> to vector<8xf32>
    %45 = vector.shape_cast %44 : vector<8xf32> to vector<8x1xf32>
    %46 = arith.mulf %43, %43 : vector<8x256xf32>
    %cst_23 = arith.constant dense<0.000000e+00> : vector<8xf32>
    %47 = vector.multi_reduction <add>, %46, %cst_23 [1] : vector<8x256xf32> to vector<8xf32>
    %48 = vector.shape_cast %47 : vector<8xf32> to vector<8x1xf32>
    %cst_24 = arith.constant 3.906250e-03 : f32
    %49 = vector.broadcast %cst_24 : f32 to vector<8x1xf32>
    %50 = arith.mulf %45, %49 : vector<8x1xf32>
    %cst_25 = arith.constant 3.906250e-03 : f32
    %51 = vector.broadcast %cst_25 : f32 to vector<8x1xf32>
    %52 = arith.mulf %48, %51 : vector<8x1xf32>
    %53 = arith.mulf %50, %50 : vector<8x1xf32>
    %54 = arith.subf %52, %53 : vector<8x1xf32>
    %55 = vector.broadcast %50 : vector<8x1xf32> to vector<8x256xf32>
    %56 = arith.subf %43, %55 : vector<8x256xf32>
    %cst_26 = arith.constant 9.99999974E-6 : f32
    %57 = vector.broadcast %cst_26 : f32 to vector<8x1xf32>
    %58 = arith.addf %54, %57 : vector<8x1xf32>
    %59 = math.rsqrt %58 : vector<8x1xf32>
    %60 = vector.broadcast %59 : vector<8x1xf32> to vector<8x256xf32>
    %61 = arith.mulf %56, %60 : vector<8x256xf32>
    %62 = vector.broadcast %4 : vector<1x256xf32> to vector<8x256xf32>
    %63 = arith.mulf %61, %62 : vector<8x256xf32>
    %64 = vector.broadcast %5 : vector<1x256xf32> to vector<8x256xf32>
    %65 = arith.addf %63, %64 : vector<8x256xf32>
    %66 = arith.truncf %65 : vector<8x256xf32> to vector<8x256xbf16>
    %c0_27 = arith.constant 0 : index
    %c0_28 = arith.constant 0 : index
    %67 = vector.load %arg4[%c0_27, %c0_28] : memref<256x128xbf16, #tpu.memory_space<vmem>>, vector<256x128xbf16>
    %cst_29 = arith.constant dense<0.000000e+00> : vector<8x128xf32>
    %68 = tpu.matmul %66, %67, %cst_29 {dimension_numbers = #tpu.dot_dimension_numbers<[1], [0], [0], [1], [0, 0, 1, 1], [], []>} : vector<8x256xbf16>, vector<256x128xbf16>, vector<8x128xf32> -> vector<8x128xf32>
    %69 = vector.broadcast %6 : vector<1x128xf32> to vector<8x128xf32>
    %70 = arith.addf %68, %69 : vector<8x128xf32>
    %71 = math.tanh %70 : vector<8x128xf32>
    %cst_30 = arith.constant dense<0.000000e+00> : vector<8xf32>
    %72 = vector.multi_reduction <add>, %71, %cst_30 [1] : vector<8x128xf32> to vector<8xf32>
    %73 = vector.shape_cast %72 : vector<8xf32> to vector<8x1xf32>
    %74 = arith.mulf %71, %71 : vector<8x128xf32>
    %cst_31 = arith.constant dense<0.000000e+00> : vector<8xf32>
    %75 = vector.multi_reduction <add>, %74, %cst_31 [1] : vector<8x128xf32> to vector<8xf32>
    %76 = vector.shape_cast %75 : vector<8xf32> to vector<8x1xf32>
    %cst_32 = arith.constant 7.812500e-03 : f32
    %77 = vector.broadcast %cst_32 : f32 to vector<8x1xf32>
    %78 = arith.mulf %73, %77 : vector<8x1xf32>
    %cst_33 = arith.constant 7.812500e-03 : f32
    %79 = vector.broadcast %cst_33 : f32 to vector<8x1xf32>
    %80 = arith.mulf %76, %79 : vector<8x1xf32>
    %81 = arith.mulf %78, %78 : vector<8x1xf32>
    %82 = arith.subf %80, %81 : vector<8x1xf32>
    %83 = vector.broadcast %78 : vector<8x1xf32> to vector<8x128xf32>
    %84 = arith.subf %71, %83 : vector<8x128xf32>
    %cst_34 = arith.constant 9.99999974E-6 : f32
    %85 = vector.broadcast %cst_34 : f32 to vector<8x1xf32>
    %86 = arith.addf %82, %85 : vector<8x1xf32>
    %87 = math.rsqrt %86 : vector<8x1xf32>
    %88 = vector.broadcast %87 : vector<8x1xf32> to vector<8x128xf32>
    %89 = arith.mulf %84, %88 : vector<8x128xf32>
    %90 = vector.broadcast %7 : vector<1x128xf32> to vector<8x128xf32>
    %91 = arith.mulf %89, %90 : vector<8x128xf32>
    %92 = vector.broadcast %8 : vector<1x128xf32> to vector<8x128xf32>
    %93 = arith.addf %91, %92 : vector<8x128xf32>
    %94 = arith.truncf %93 : vector<8x128xf32> to vector<8x128xbf16>
    %c0_35 = arith.constant 0 : index
    %c0_36 = arith.constant 0 : index
    %95 = vector.load %arg5[%c0_35, %c0_36] : memref<128x128xbf16, #tpu.memory_space<vmem>>, vector<128x128xbf16>
    %cst_37 = arith.constant dense<0.000000e+00> : vector<8x128xf32>
    %96 = tpu.matmul %94, %95, %cst_37 {dimension_numbers = #tpu.dot_dimension_numbers<[1], [0], [0], [1], [0, 0, 1, 1], [], []>} : vector<8x128xbf16>, vector<128x128xbf16>, vector<8x128xf32> -> vector<8x128xf32>
    %97 = vector.broadcast %9 : vector<1x128xf32> to vector<8x128xf32>
    %98 = arith.addf %96, %97 : vector<8x128xf32>
    %c0_38 = arith.constant 0 : index
    %c0_39 = arith.constant 0 : index
    %99 = vector.load %arg7[%c0_38, %c0_39] : memref<8x128xf32, #tpu.memory_space<vmem>>, vector<8x128xf32>
    tpu.vector_store %arg7[%c0_38, %c0_39], %98 {strides = array<i32>} : memref<8x128xf32, #tpu.memory_space<vmem>>, vector<8x128xf32>,
    return
  }
  func.func @transform_0(%arg0: i32) -> (i32, i32) {
    %c0_i32 = arith.constant 0 : i32
    %c0_i32_0 = arith.constant 0 : i32
    return %arg0, %c0_i32 : i32, i32
  }
  func.func @transform_1(%arg0: i32) -> (i32, i32) {
    %c0_i32 = arith.constant 0 : i32
    %c0_i32_0 = arith.constant 0 : i32
    %c0_i32_1 = arith.constant 0 : i32
    return %c0_i32, %c0_i32_0 : i32, i32
  }
  func.func @transform_2(%arg0: i32) -> (i32, i32) {
    %c0_i32 = arith.constant 0 : i32
    %c0_i32_0 = arith.constant 0 : i32
    %c0_i32_1 = arith.constant 0 : i32
    return %c0_i32, %c0_i32_0 : i32, i32
  }
  func.func @transform_3(%arg0: i32) -> (i32, i32) {
    %c0_i32 = arith.constant 0 : i32
    %c0_i32_0 = arith.constant 0 : i32
    %c0_i32_1 = arith.constant 0 : i32
    return %c0_i32, %c0_i32_0 : i32, i32
  }
  func.func @transform_4(%arg0: i32) -> (i32, i32) {
    %c0_i32 = arith.constant 0 : i32
    %c0_i32_0 = arith.constant 0 : i32
    %c0_i32_1 = arith.constant 0 : i32
    return %c0_i32, %c0_i32_0 : i32, i32
  }
  func.func @transform_5(%arg0: i32) -> (i32, i32) {
    %c0_i32 = arith.constant 0 : i32
    %c0_i32_0 = arith.constant 0 : i32
    %c0_i32_1 = arith.constant 0 : i32
    return %c0_i32, %c0_i32_0 : i32, i32
  }
  func.func @transform_6(%arg0: i32) -> (i32, i32) {
    %c0_i32 = arith.constant 0 : i32
    %c0_i32_0 = arith.constant 0 : i32
    return %arg0, %c0_i32 : i32, i32
  }
}

</mosaic_0001>

<llo_original>
// kernel: tpu_custom_call.1
$region0: #{tpu_custom_call.1}
  #allocation0 [shape = 'u32[]', space=smem, size = 0x4, offset = 0x4, fixed_abs, tag = 'smem constant byte address 0x4 - core index']
  #allocation1 [shape = 'u32[144,128]{1,0:T(1,128)}', space=vmem, size = 0x12000, scoped, tag = 'internal scratch']
  %s0 = inlined_call_operand.hbm [shape: bf16[8,32], index: 0, kind: input, shape index: {}]
  %s1 = inlined_call_operand.hbm [shape: bf16[32,512], index: 1, kind: input, shape index: {}]
  %s2 = inlined_call_operand.hbm [shape: bf16[512,256], index: 2, kind: input, shape index: {}]
  %s3 = inlined_call_operand.hbm [shape: bf16[256,128], index: 3, kind: input, shape index: {}]
  %s4 = inlined_call_operand.hbm [shape: bf16[128,128], index: 4, kind: input, shape index: {}]
  %s5 = inlined_call_operand.hbm [shape: f32[16,512], index: 5, kind: input, shape index: {}]
  %s6 = inlined_call_operand.hbm [shape: f32[8,128], index: 6, kind: output, shape index: {}]
  %s7 = sld [smem:[#allocation0]]
  $region58: #{tpu_custom_call.1} parent=0
    _
  %s9 = ssub.s32 1, %s7
  %s10 = scalar_select 0, %s9, %s7
  $region1: #{tpu_custom_call.1} parent=0
    #allocation2 [shape = 'u8[2048]{0}', space=vmem, size = 0x800, scoped, tag = 'input window, operand 0, single buffered']
    #allocation3 [shape = 's32[1]{0}', space=sflag, size = 0x4, scoped, tag = 'scoped memory for tpu_custom_call.1']
    #allocation4 [shape = 's32[1]{0}', space=sflag, size = 0x4, scoped, tag = 'scoped memory for tpu_custom_call.1']
    #allocation5 [shape = 'u8[32768]{0}', space=vmem, size = 0x8000, scoped, tag = 'input window, operand 1, single buffered']
    #allocation6 [shape = 's32[1]{0}', space=sflag, size = 0x4, scoped, tag = 'scoped memory for tpu_custom_call.1']
    #allocation7 [shape = 'u8[262144]{0}', space=vmem, size = 0x40000, scoped, tag = 'input window, operand 2, single buffered']
    #allocation8 [shape = 'u8[65536]{0}', space=vmem, size = 0x10000, scoped, tag = 'input window, operand 3, single buffered']
    #allocation9 [shape = 's32[1]{0}', space=sflag, size = 0x4, scoped, tag = 'scoped memory for tpu_custom_call.1']
    #allocation10 [shape = 'u8[32768]{0}', space=vmem, size = 0x8000, scoped, tag = 'input window, operand 4, single buffered']
    #allocation11 [shape = 'u8[32768]{0}', space=vmem, size = 0x8000, scoped, tag = 'input window, operand 5, single buffered']
    #allocation12 [shape = 's32[1]{0}', space=sflag, size = 0x4, scoped, tag = 'scoped memory for tpu_custom_call.1']
    #allocation13 [shape = 'u8[4096]{0}', space=vmem, size = 0x1000, scoped, tag = 'output window, operand 0, single buffered']
    %11 = vsyncpa [#allocation3], 0
    %12 = vsyncpa [#allocation6], 0
    %13 = vsyncpa [#allocation9], 0
    %14 = vsyncpa [#allocation12], 0
    %15 = vsyncpa [#allocation4], 0
    // Predicated region
    $region2: #{tpu_custom_call.1} parent=1 // pred_check
      _
    $region3: #{tpu_custom_call.1} parent=1 // pred_check_branch
      %17 = sbr.rel (0) target = $region5
    $region4: #{tpu_custom_call.1} parent=1 // pred_region
      %s19 = ssub.s32 64, 64
      %20 = vsyncadd [#allocation3], %s19
      %s22 = sshll.u32 [#allocation2], 4
      %s23 = int_to_ptr.vmem [resolvable:$true] %s22
      %25 = dma.hbm_to_vmem [thread:$0]  %s0, 64, %s23, [#allocation3]
    $region5: #{tpu_custom_call.1} parent=1 // pred_fallthru
      _
    // Predicated region
    $region6: #{tpu_custom_call.1} parent=1 // pred_check
      _
    $region7: #{tpu_custom_call.1} parent=1 // pred_check_branch
      %27 = sbr.rel (0) target = $region9
    $region8: #{tpu_custom_call.1} parent=1 // pred_region
      %s29 = ssub.s32 1024, 1024
      %30 = vsyncadd [#allocation6], %s29
      %s31 = sshll.u32 [#allocation5], 4
      %s32 = int_to_ptr.vmem [resolvable:$true] %s31
      %37 = dma.hbm_to_vmem [thread:$0]  %s1, 1024, %s32, [#allocation6], 256, 256, 16
    $region9: #{tpu_custom_call.1} parent=1 // pred_fallthru
      _
    // Predicated region
    $region10: #{tpu_custom_call.1} parent=1 // pred_check
      _
    $region11: #{tpu_custom_call.1} parent=1 // pred_check_branch
      %39 = sbr.rel (0) target = $region13
    $region12: #{tpu_custom_call.1} parent=1 // pred_region
      %s41 = ssub.s32 8192, 8192
      %42 = vsyncadd [#allocation6], %s41
      %s43 = sshll.u32 [#allocation7], 4
      %s44 = int_to_ptr.vmem [resolvable:$true] %s43
      %49 = dma.hbm_to_vmem [thread:$0]  %s2, 8192, %s44, [#allocation6], 128, 128, 8
    $region13: #{tpu_custom_call.1} parent=1 // pred_fallthru
      _
    // Predicated region
    $region14: #{tpu_custom_call.1} parent=1 // pred_check
      _
    $region15: #{tpu_custom_call.1} parent=1 // pred_check_branch
      %51 = sbr.rel (0) target = $region17
    $region16: #{tpu_custom_call.1} parent=1 // pred_region
      %s53 = ssub.s32 2048, 2048
      %54 = vsyncadd [#allocation9], %s53
      %s55 = sshll.u32 [#allocation8], 4
      %s56 = int_to_ptr.vmem [resolvable:$true] %s55
      %61 = dma.hbm_to_vmem [thread:$0]  %s3, 2048, %s56, [#allocation9], 64, 64, 4
    $region17: #{tpu_custom_call.1} parent=1 // pred_fallthru
      _
    // Predicated region
    $region18: #{tpu_custom_call.1} parent=1 // pred_check
      _
    $region19: #{tpu_custom_call.1} parent=1 // pred_check_branch
      %63 = sbr.rel (0) target = $region21
    $region20: #{tpu_custom_call.1} parent=1 // pred_region
      %s65 = ssub.s32 1024, 1024
      %66 = vsyncadd [#allocation9], %s65
      %s67 = sshll.u32 [#allocation10], 4
      %s68 = int_to_ptr.vmem [resolvable:$true] %s67
      %73 = dma.hbm_to_vmem [thread:$0]  %s4, 1024, %s68, [#allocation9], 64, 64, 4
    $region21: #{tpu_custom_call.1} parent=1 // pred_fallthru
      _
    // Predicated region
    $region22: #{tpu_custom_call.1} parent=1 // pred_check
      _
    $region23: #{tpu_custom_call.1} parent=1 // pred_check_branch
      %75 = sbr.rel (0) target = $region25
    $region24: #{tpu_custom_call.1} parent=1 // pred_region
      %s77 = ssub.s32 1024, 1024
      %78 = vsyncadd [#allocation12], %s77
      %s79 = sshll.u32 [#allocation11], 4
      %s80 = int_to_ptr.vmem [resolvable:$true] %s79
      %85 = dma.hbm_to_vmem [thread:$0]  %s5, 1024, %s80, [#allocation12], 512, 512, 32
    $region25: #{tpu_custom_call.1} parent=1 // pred_fallthru
      _
    // Predicated region
    $region26: #{tpu_custom_call.1} parent=1 // pred_check
      _
    $region27: #{tpu_custom_call.1} parent=1 // pred_check_branch
      %87 = sbr.rel (0) target = $region29
    $region28: #{tpu_custom_call.1} parent=1 // pred_region
      %88 = dma.done [#allocation3], 64
    $region29: #{tpu_custom_call.1} parent=1 // pred_fallthru
      _
    // Predicated region
    $region30: #{tpu_custom_call.1} parent=1 // pred_check
      _
    $region31: #{tpu_custom_call.1} parent=1 // pred_check_branch
      %90 = sbr.rel (0) target = $region33
    $region32: #{tpu_custom_call.1} parent=1 // pred_region
      %91 = dma.done [#allocation6], 1024
    $region33: #{tpu_custom_call.1} parent=1 // pred_fallthru
      _
    // Predicated region
    $region34: #{tpu_custom_call.1} parent=1 // pred_check
      _
    $region35: #{tpu_custom_call.1} parent=1 // pred_check_branch
      %93 = sbr.rel (0) target = $region37
    $region36: #{tpu_custom_call.1} parent=1 // pred_region
      %94 = dma.done [#allocation6], 8192
    $region37: #{tpu_custom_call.1} parent=1 // pred_fallthru
      _
    // Predicated region
    $region38: #{tpu_custom_call.1} parent=1 // pred_check
      _
    $region39: #{tpu_custom_call.1} parent=1 // pred_check_branch
      %96 = sbr.rel (0) target = $region41
    $region40: #{tpu_custom_call.1} parent=1 // pred_region
      %97 = dma.done [#allocation9], 2048
    $region41: #{tpu_custom_call.1} parent=1 // pred_fallthru
      _
    // Predicated region
    $region42: #{tpu_custom_call.1} parent=1 // pred_check
      _
    $region43: #{tpu_custom_call.1} parent=1 // pred_check_branch
      %99 = sbr.rel (0) target = $region45
    $region44: #{tpu_custom_call.1} parent=1 // pred_region
      %100 = dma.done [#allocation9], 1024
    $region45: #{tpu_custom_call.1} parent=1 // pred_fallthru
      _
    // Predicated region
    $region46: #{tpu_custom_call.1} parent=1 // pred_check
      _
    $region47: #{tpu_custom_call.1} parent=1 // pred_check_branch
      %102 = sbr.rel (0) target = $region49
    $region48: #{tpu_custom_call.1} parent=1 // pred_region
      %103 = dma.done [#allocation12], 1024
    $region49: #{tpu_custom_call.1} parent=1 // pred_fallthru
      _
    %v105 = vld [vmem:[#allocation11] ss:$8 sm:$0xf]
    %s106 = scalar_lea.vmem [#allocation11], 1
    %v107 = vld [vmem:[%s106] ss:$8 sm:$0xf]
    %s108 = scalar_lea.vmem [#allocation11], 2
    %v109 = vld [vmem:[%s108] ss:$8 sm:$0xf]
    %s110 = scalar_lea.vmem [#allocation11], 3
    %v111 = vld [vmem:[%s110] ss:$8 sm:$0x3]
    %s112 = scalar_lea.vmem [#allocation11], 4
    %v113 = vld [vmem:[%s112] ss:$8 sm:$0x3]
    %s114 = scalar_lea.vmem [#allocation11], 5
    %v115 = vld [vmem:[%s114] ss:$8 sm:$0x3]
    %v116 = vld [vmem:[#allocation11 + $0x6] ss:$0 sm:$0xff]
    %v117 = vld [vmem:[#allocation11 + $0x7] ss:$0 sm:$0xff]
    %v118 = vld [vmem:[#allocation11 + $0x20] ss:$0 sm:$0xff]
    %v119 = vld [vmem:[#allocation11 + $0x21] ss:$0 sm:$0xff]
    %v120 = vld [vmem:[#allocation2] sm:$0xf]
    %v121 = vld [vmem:[#allocation5] sm:$0xff]
    %v122 = vld [vmem:[#allocation5 + $0x8] sm:$0xff]
    %v123 = vld [vmem:[#allocation5 + $0x10] sm:$0xff]
    %v124 = vld [vmem:[#allocation5 + $0x18] sm:$0xff]
    %v125 = vld [vmem:[#allocation5 + $0x20] sm:$0xff]
    %v126 = vld [vmem:[#allocation5 + $0x28] sm:$0xff]
    %v127 = vld [vmem:[#allocation5 + $0x30] sm:$0xff]
    %v128 = vld [vmem:[#allocation5 + $0x38] sm:$0xff]
    %v130 = vlaneseq
    %v131 = vshrl.u32 %v130, 7
    %v132 = vsub.s32 0, %v131
    %v133 = vrot.slane %v105, %v132
    %v134 = vlaneseq
    %v135 = vshrl.u32 %v134, 7
    %v136 = vsub.s32 1, %v135
    %v137 = vrot.slane %v105, %v136
    %v138 = vlaneseq
    %v139 = vshrl.u32 %v138, 7
    %v140 = vsub.s32 2, %v139
    %v141 = vrot.slane %v105, %v140
    %v142 = vlaneseq
    %v143 = vshrl.u32 %v142, 7
    %v144 = vsub.s32 3, %v143
    %v145 = vrot.slane %v105, %v144
    %v158 = vunpack.c.l.b16 %v121
    %v159 = vunpack.c.h.b16 %v121
    %v160 = vunpack.c.l.b16 %v122
    %v161 = vunpack.c.h.b16 %v122
    %v162 = vunpack.c.l.b16 %v123
    %v163 = vunpack.c.h.b16 %v123
    %v164 = vunpack.c.l.b16 %v124
    %v165 = vunpack.c.h.b16 %v124
    %v166 = vunpack.c.l.b16 %v125
    %v167 = vunpack.c.h.b16 %v125
    %v168 = vunpack.c.l.b16 %v126
    %v169 = vunpack.c.h.b16 %v126
    %v170 = vunpack.c.l.b16 %v127
    %v171 = vunpack.c.h.b16 %v127
    %v172 = vunpack.c.l.b16 %v128
    %v173 = vunpack.c.h.b16 %v128
    %v174 = vpack.c.b16 %v162, %v158
    %v175 = vpack.c.b16 %v163, %v159
    %v176 = vpack.c.b16 %v164, %v160
    %v177 = vpack.c.b16 %v165, %v161
    %v178 = vpack.c.b16 %v170, %v166
    %v179 = vpack.c.b16 %v171, %v167
    %v180 = vpack.c.b16 %v172, %v168
    %v181 = vpack.c.b16 %v173, %v169
    %vm190 = vcmask 261120
    %v192 = vsel %vm190, %v120, 0
    %194 = vmatprep.subr.bf16.mxu0 %v175
    %195 = vmatpush1.bf16.msra.mxu0 %v174
    %196 = vmatprep.subr.bf16.mxu0 %v179
    %197 = vmatpush1.bf16.msra.mxu0 %v178
    %198 = vmatprep.subr.bf16.mxu0 0
    %199 = vmatpush1.bf16.msra.mxu0 0
    %200 = vmatprep.subr.bf16.mxu0 0
    %201 = vmatpush1.bf16.msra.mxu0 0
    %202 = vmatprep.subr.bf16.mxu0 0
    %203 = vmatpush1.bf16.msra.mxu0 0
    %204 = vmatprep.subr.bf16.mxu0 0
    %205 = vmatpush1.bf16.msra.mxu0 0
    %206 = vmatprep.subr.bf16.mxu0 0
    %207 = vmatpush1.bf16.msra.mxu0 0
    %208 = vmatprep.subr.bf16.mxu0 0
    %209 = vmatpush1.bf16.msra.mxu0 0
    %210 = vmatprep.subr.bf16.mxu0 0
    %211 = vmatpush1.bf16.msra.mxu0 0
    %212 = vmatprep.subr.bf16.mxu0 0
    %213 = vmatpush1.bf16.msra.mxu0 0
    %214 = vmatprep.subr.bf16.mxu0 0
    %215 = vmatpush1.bf16.msra.mxu0 0
    %216 = vmatprep.subr.bf16.mxu0 0
    %217 = vmatpush1.bf16.msra.mxu0 0
    %218 = vmatprep.subr.bf16.mxu0 0
    %219 = vmatpush1.bf16.msra.mxu0 0
    %220 = vmatprep.subr.bf16.mxu0 0
    %221 = vmatpush1.bf16.msra.mxu0 0
    %222 = vmatprep.subr.bf16.mxu0 0
    %223 = vmatpush1.bf16.msra.mxu0 0
    %224 = vmatprep.subr.bf16.mxu0 0
    %225 = vmatpush1.bf16.msra.mxu0 0
    %226 = vmatprep.mubr.bf16.mxu0 0
    %227 = vmatmul.mubr.bf16.gmra.mrb[0].mxu0 %v192
    %v228 = vpop.f32.mrb[0].mxu0
    %v229 = vadd.f32 %v133, %v228
    %v230 = vpop.f32.mrb[0].mxu0
    %v231 = vadd.f32 %v137, %v230
    %v232 = vpop.f32.mrb[0].mxu0
    %v233 = vpop.f32.mrb[0].mxu0
    %234 = vdwg.mxu0
    %235 = vmatprep.subr.bf16.mxu0 %v177
    %236 = vmatpush1.bf16.msra.mxu0 %v176
    %237 = vmatprep.subr.bf16.mxu0 %v181
    %238 = vmatpush1.bf16.msra.mxu0 %v180
    %239 = vmatprep.subr.bf16.mxu0 0
    %240 = vmatpush1.bf16.msra.mxu0 0
    %241 = vmatprep.subr.bf16.mxu0 0
    %242 = vmatpush1.bf16.msra.mxu0 0
    %243 = vmatprep.subr.bf16.mxu0 0
    %244 = vmatpush1.bf16.msra.mxu0 0
    %245 = vmatprep.subr.bf16.mxu0 0
    %246 = vmatpush1.bf16.msra.mxu0 0
    %247 = vmatprep.subr.bf16.mxu0 0
    %248 = vmatpush1.bf16.msra.mxu0 0
    %249 = vmatprep.subr.bf16.mxu0 0
    %250 = vmatpush1.bf16.msra.mxu0 0
    %251 = vmatprep.subr.bf16.mxu0 0
    %252 = vmatpush1.bf16.msra.mxu0 0
    %253 = vmatprep.subr.bf16.mxu0 0
    %254 = vmatpush1.bf16.msra.mxu0 0
    %255 = vmatprep.subr.bf16.mxu0 0
    %256 = vmatpush1.bf16.msra.mxu0 0
    %257 = vmatprep.subr.bf16.mxu0 0
    %258 = vmatpush1.bf16.msra.mxu0 0
    %259 = vmatprep.subr.bf16.mxu0 0
    %260 = vmatpush1.bf16.msra.mxu0 0
    %261 = vmatprep.subr.bf16.mxu0 0
    %262 = vmatpush1.bf16.msra.mxu0 0
    %263 = vmatprep.subr.bf16.mxu0 0
    %264 = vmatpush1.bf16.msra.mxu0 0
    %265 = vmatprep.subr.bf16.mxu0 0
    %266 = vmatpush1.bf16.msra.mxu0 0
    %267 = vmatprep.mubr.bf16.mxu0 0
    %268 = vmatmul.mubr.bf16.gmra.mrb[0].mxu0 %v192
    %v269 = vpop.f32.mrb[0].mxu0
    %v270 = vadd.f32 %v141, %v269
    %v271 = vpop.f32.mrb[0].mxu0
    %v272 = vadd.f32 %v145, %v271
    %v273 = vpop.f32.mrb[0].mxu0
    %v274 = vpop.f32.mrb[0].mxu0
    %275 = vdwg.mxu0
    %v276 = vtanh.pop %v229
    %v277 = vtanh.pop %v231
    %v278 = vtanh.pop %v270
    %v279 = vtanh.pop %v272
    %v280 = vadd.f32 %v276, %v277
    %v281 = vadd.f32 %v280, %v278
    %v282 = vadd.f32 %v281, %v279
    %283 = vadd.xlane.f32.xlu0 %v282
    %v284 = vpop.xlane.xlu0 %283
    %v285 = vmul.f32 %v276, %v276
    %v286 = vmul.f32 %v277, %v277
    %v287 = vmul.f32 %v278, %v278
    %v288 = vmul.f32 %v279, %v279
    %v289 = vadd.f32 %v285, %v286
    %v290 = vadd.f32 %v289, %v287
    %v291 = vadd.f32 %v290, %v288
    %292 = vadd.xlane.f32.xlu0 %v291
    %v293 = vpop.xlane.xlu0 %292
    %v294 = vmul.f32 %v284, 0.001953125
    %v295 = vmul.f32 %v293, 0.001953125
    %v296 = vmul.f32 %v294, %v294
    %v297 = vsub.f32 %v295, %v296
    %v298 = vsub.f32 %v276, %v294
    %v299 = vsub.f32 %v277, %v294
    %v300 = vsub.f32 %v278, %v294
    %v301 = vsub.f32 %v279, %v294
    %v302 = vadd.f32 %v297, 1e-05
    %v303 = vrsqrt.pop %v302
    %v304 = vmul.f32 %v298, %v303
    %v305 = vmul.f32 %v299, %v303
    %v306 = vmul.f32 %v300, %v303
    %v307 = vmul.f32 %v301, %v303
    %v309 = vlaneseq
    %v310 = vshrl.u32 %v309, 7
    %v311 = vsub.s32 0, %v310
    %v312 = vrot.slane %v107, %v311
    %v313 = vlaneseq
    %v314 = vshrl.u32 %v313, 7
    %v315 = vsub.s32 1, %v314
    %v316 = vrot.slane %v107, %v315
    %v317 = vlaneseq
    %v318 = vshrl.u32 %v317, 7
    %v319 = vsub.s32 2, %v318
    %v320 = vrot.slane %v107, %v319
    %v321 = vlaneseq
    %v322 = vshrl.u32 %v321, 7
    %v323 = vsub.s32 3, %v322
    %v324 = vrot.slane %v107, %v323
    %v329 = vmul.f32 %v304, %v312
    %v330 = vmul.f32 %v305, %v316
    %v331 = vmul.f32 %v306, %v320
    %v332 = vmul.f32 %v307, %v324
    %v334 = vlaneseq
    %v335 = vshrl.u32 %v334, 7
    %v336 = vsub.s32 0, %v335
    %v337 = vrot.slane %v109, %v336
    %v338 = vlaneseq
    %v339 = vshrl.u32 %v338, 7
    %v340 = vsub.s32 1, %v339
    %v341 = vrot.slane %v109, %v340
    %v342 = vlaneseq
    %v343 = vshrl.u32 %v342, 7
    %v344 = vsub.s32 2, %v343
    %v345 = vrot.slane %v109, %v344
    %v346 = vlaneseq
    %v347 = vshrl.u32 %v346, 7
    %v348 = vsub.s32 3, %v347
    %v349 = vrot.slane %v109, %v348
    %v354 = vadd.f32 %v329, %v337
    %v355 = vadd.f32 %v330, %v341
    %v356 = vadd.f32 %v331, %v345
    %v357 = vadd.f32 %v332, %v349
    %v358 = vpack.c.bf16 %v354, %v354
    %v359 = vpack.c.bf16 %v355, %v355
    %v360 = vpack.c.bf16 %v356, %v356
    %v361 = vpack.c.bf16 %v357, %v357
    %v362 = vld [vmem:[#allocation7] sm:$0xff]
    %v363 = vld [vmem:[#allocation7 + $0x8] sm:$0xff]
    %v364 = vld [vmem:[#allocation7 + $0x10] sm:$0xff]
    %v365 = vld [vmem:[#allocation7 + $0x18] sm:$0xff]
    %v366 = vld [vmem:[#allocation7 + $0x20] sm:$0xff]
    %v367 = vld [vmem:[#allocation7 + $0x28] sm:$0xff]
    %v368 = vld [vmem:[#allocation7 + $0x30] sm:$0xff]
    %v369 = vld [vmem:[#allocation7 + $0x38] sm:$0xff]
    %v370 = vld [vmem:[#allocation7 + $0x40] sm:$0xff]
    %v371 = vld [vmem:[#allocation7 + $0x48] sm:$0xff]
    %v372 = vld [vmem:[#allocation7 + $0x50] sm:$0xff]
    %v373 = vld [vmem:[#allocation7 + $0x58] sm:$0xff]
    %v374 = vld [vmem:[#allocation7 + $0x60] sm:$0xff]
    %v375 = vld [vmem:[#allocation7 + $0x68] sm:$0xff]
    %v376 = vld [vmem:[#allocation7 + $0x70] sm:$0xff]
    %v377 = vld [vmem:[#allocation7 + $0x78] sm:$0xff]
    %v378 = vld [vmem:[#allocation7 + $0x80] sm:$0xff]
    %v379 = vld [vmem:[#allocation7 + $0x88] sm:$0xff]
    %v380 = vld [vmem:[#allocation7 + $0x90] sm:$0xff]
    %v381 = vld [vmem:[#allocation7 + $0x98] sm:$0xff]
    %v382 = vld [vmem:[#allocation7 + $0xa0] sm:$0xff]
    %v383 = vld [vmem:[#allocation7 + $0xa8] sm:$0xff]
    %v384 = vld [vmem:[#allocation7 + $0xb0] sm:$0xff]
    %v385 = vld [vmem:[#allocation7 + $0xb8] sm:$0xff]
    %v386 = vld [vmem:[#allocation7 + $0xc0] sm:$0xff]
    %v387 = vld [vmem:[#allocation7 + $0xc8] sm:$0xff]
    %v388 = vld [vmem:[#allocation7 + $0xd0] sm:$0xff]
    %v389 = vld [vmem:[#allocation7 + $0xd8] sm:$0xff]
    %v390 = vld [vmem:[#allocation7 + $0xe0] sm:$0xff]
    %v391 = vld [vmem:[#allocation7 + $0xe8] sm:$0xff]
    %v392 = vld [vmem:[#allocation7 + $0xf0] sm:$0xff]
    %v393 = vld [vmem:[#allocation7 + $0xf8] sm:$0xff]
    %v394 = vld [vmem:[#allocation7 + $0x100] sm:$0xff]
    %v395 = vld [vmem:[#allocation7 + $0x108] sm:$0xff]
    %v396 = vld [vmem:[#allocation7 + $0x110] sm:$0xff]
    %v397 = vld [vmem:[#allocation7 + $0x118] sm:$0xff]
    %v398 = vld [vmem:[#allocation7 + $0x120] sm:$0xff]
    %v399 = vld [vmem:[#allocation7 + $0x128] sm:$0xff]
    %v400 = vld [vmem:[#allocation7 + $0x130] sm:$0xff]
    %v401 = vld [vmem:[#allocation7 + $0x138] sm:$0xff]
    %v402 = vld [vmem:[#allocation7 + $0x140] sm:$0xff]
    %v403 = vld [vmem:[#allocation7 + $0x148] sm:$0xff]
    %v404 = vld [vmem:[#allocation7 + $0x150] sm:$0xff]
    %v405 = vld [vmem:[#allocation7 + $0x158] sm:$0xff]
    %v406 = vld [vmem:[#allocation7 + $0x160] sm:$0xff]
    %v407 = vld [vmem:[#allocation7 + $0x168] sm:$0xff]
    %v408 = vld [vmem:[#allocation7 + $0x170] sm:$0xff]
    %v409 = vld [vmem:[#allocation7 + $0x178] sm:$0xff]
    %v410 = vld [vmem:[#allocation7 + $0x180] sm:$0xff]
    %v411 = vld [vmem:[#allocation7 + $0x188] sm:$0xff]
    %v412 = vld [vmem:[#allocation7 + $0x190] sm:$0xff]
    %v413 = vld [vmem:[#allocation7 + $0x198] sm:$0xff]
    %v414 = vld [vmem:[#allocation7 + $0x1a0] sm:$0xff]
    %v415 = vld [vmem:[#allocation7 + $0x1a8] sm:$0xff]
    %v416 = vld [vmem:[#allocation7 + $0x1b0] sm:$0xff]
    %v417 = vld [vmem:[#allocation7 + $0x1b8] sm:$0xff]
    %v418 = vld [vmem:[#allocation7 + $0x1c0] sm:$0xff]
    %v419 = vld [vmem:[#allocation7 + $0x1c8] sm:$0xff]
    %v420 = vld [vmem:[#allocation7 + $0x1d0] sm:$0xff]
    %v421 = vld [vmem:[#allocation7 + $0x1d8] sm:$0xff]
    %v422 = vld [vmem:[#allocation7 + $0x1e0] sm:$0xff]
    %v423 = vld [vmem:[#allocation7 + $0x1e8] sm:$0xff]
    %v424 = vld [vmem:[#allocation7 + $0x1f0] sm:$0xff]
    %v425 = vld [vmem:[#allocation7 + $0x1f8] sm:$0xff]
    %v427 = vlaneseq
    %v428 = vshrl.u32 %v427, 7
    %v429 = vsub.s32 0, %v428
    %v430 = vrot.slane %v111, %v429
    %v431 = vlaneseq
    %v432 = vshrl.u32 %v431, 7
    %v433 = vsub.s32 1, %v432
    %v434 = vrot.slane %v111, %v433
    %v501 = vunpack.c.l.b16 %v362
    %v502 = vunpack.c.h.b16 %v362
    %v503 = vunpack.c.l.b16 %v363
    %v504 = vunpack.c.h.b16 %v363
    %v505 = vunpack.c.l.b16 %v364
    %v506 = vunpack.c.h.b16 %v364
    %v507 = vunpack.c.l.b16 %v365
    %v508 = vunpack.c.h.b16 %v365
    %v509 = vunpack.c.l.b16 %v366
    %v510 = vunpack.c.h.b16 %v366
    %v511 = vunpack.c.l.b16 %v367
    %v512 = vunpack.c.h.b16 %v367
    %v513 = vunpack.c.l.b16 %v368
    %v514 = vunpack.c.h.b16 %v368
    %v515 = vunpack.c.l.b16 %v369
    %v516 = vunpack.c.h.b16 %v369
    %v517 = vunpack.c.l.b16 %v370
    %v518 = vunpack.c.h.b16 %v370
    %v519 = vunpack.c.l.b16 %v371
    %v520 = vunpack.c.h.b16 %v371
    %v521 = vunpack.c.l.b16 %v372
    %v522 = vunpack.c.h.b16 %v372
    %v523 = vunpack.c.l.b16 %v373
    %v524 = vunpack.c.h.b16 %v373
    %v525 = vunpack.c.l.b16 %v374
    %v526 = vunpack.c.h.b16 %v374
    %v527 = vunpack.c.l.b16 %v375
    %v528 = vunpack.c.h.b16 %v375
    %v529 = vunpack.c.l.b16 %v376
    %v530 = vunpack.c.h.b16 %v376
    %v531 = vunpack.c.l.b16 %v377
    %v532 = vunpack.c.h.b16 %v377
    %v533 = vunpack.c.l.b16 %v378
    %v534 = vunpack.c.h.b16 %v378
    %v535 = vunpack.c.l.b16 %v379
    %v536 = vunpack.c.h.b16 %v379
    %v537 = vunpack.c.l.b16 %v380
    %v538 = vunpack.c.h.b16 %v380
    %v539 = vunpack.c.l.b16 %v381
    %v540 = vunpack.c.h.b16 %v381
    %v541 = vunpack.c.l.b16 %v382
    %v542 = vunpack.c.h.b16 %v382
    %v543 = vunpack.c.l.b16 %v383
    %v544 = vunpack.c.h.b16 %v383
    %v545 = vunpack.c.l.b16 %v384
    %v546 = vunpack.c.h.b16 %v384
    %v547 = vunpack.c.l.b16 %v385
    %v548 = vunpack.c.h.b16 %v385
    %v549 = vunpack.c.l.b16 %v386
    %v550 = vunpack.c.h.b16 %v386
    %v551 = vunpack.c.l.b16 %v387
    %v552 = vunpack.c.h.b16 %v387
    %v553 = vunpack.c.l.b16 %v388
    %v554 = vunpack.c.h.b16 %v388
    %v555 = vunpack.c.l.b16 %v389
    %v556 = vunpack.c.h.b16 %v389
    %v557 = vunpack.c.l.b16 %v390
    %v558 = vunpack.c.h.b16 %v390
    %v559 = vunpack.c.l.b16 %v391
    %v560 = vunpack.c.h.b16 %v391
    %v561 = vunpack.c.l.b16 %v392
    %v562 = vunpack.c.h.b16 %v392
    %v563 = vunpack.c.l.b16 %v393
    %v564 = vunpack.c.h.b16 %v393
    %v565 = vunpack.c.l.b16 %v394
    %v566 = vunpack.c.h.b16 %v394
    %v567 = vunpack.c.l.b16 %v395
    %v568 = vunpack.c.h.b16 %v395
    %v569 = vunpack.c.l.b16 %v396
    %v570 = vunpack.c.h.b16 %v396
    %v571 = vunpack.c.l.b16 %v397
    %v572 = vunpack.c.h.b16 %v397
    %v573 = vunpack.c.l.b16 %v398
    %v574 = vunpack.c.h.b16 %v398
    %v575 = vunpack.c.l.b16 %v399
    %v576 = vunpack.c.h.b16 %v399
    %v577 = vunpack.c.l.b16 %v400
    %v578 = vunpack.c.h.b16 %v400
    %v579 = vunpack.c.l.b16 %v401
    %v580 = vunpack.c.h.b16 %v401
    %v581 = vunpack.c.l.b16 %v402
    %v582 = vunpack.c.h.b16 %v402
    %v583 = vunpack.c.l.b16 %v403
    %v584 = vunpack.c.h.b16 %v403
    %v585 = vunpack.c.l.b16 %v404
    %v586 = vunpack.c.h.b16 %v404
    %v587 = vunpack.c.l.b16 %v405
    %v588 = vunpack.c.h.b16 %v405
    %v589 = vunpack.c.l.b16 %v406
    %v590 = vunpack.c.h.b16 %v406
    %v591 = vunpack.c.l.b16 %v407
    %v592 = vunpack.c.h.b16 %v407
    %v593 = vunpack.c.l.b16 %v408
    %v594 = vunpack.c.h.b16 %v408
    %v595 = vunpack.c.l.b16 %v409
    %v596 = vunpack.c.h.b16 %v409
    %v597 = vunpack.c.l.b16 %v410
    %v598 = vunpack.c.h.b16 %v410
    %v599 = vunpack.c.l.b16 %v411
    %v600 = vunpack.c.h.b16 %v411
    %v601 = vunpack.c.l.b16 %v412
    %v602 = vunpack.c.h.b16 %v412
    %v603 = vunpack.c.l.b16 %v413
    %v604 = vunpack.c.h.b16 %v413
    %v605 = vunpack.c.l.b16 %v414
    %v606 = vunpack.c.h.b16 %v414
    %v607 = vunpack.c.l.b16 %v415
    %v608 = vunpack.c.h.b16 %v415
    %v609 = vunpack.c.l.b16 %v416
    %v610 = vunpack.c.h.b16 %v416
    %v611 = vunpack.c.l.b16 %v417
    %v612 = vunpack.c.h.b16 %v417
    %v613 = vunpack.c.l.b16 %v418
    %v614 = vunpack.c.h.b16 %v418
    %v615 = vunpack.c.l.b16 %v419
    %v616 = vunpack.c.h.b16 %v419
    %v617 = vunpack.c.l.b16 %v420
    %v618 = vunpack.c.h.b16 %v420
    %v619 = vunpack.c.l.b16 %v421
    %v620 = vunpack.c.h.b16 %v421
    %v621 = vunpack.c.l.b16 %v422
    %v622 = vunpack.c.h.b16 %v422
    %v623 = vunpack.c.l.b16 %v423
    %v624 = vunpack.c.h.b16 %v423
    %v625 = vunpack.c.l.b16 %v424
    %v626 = vunpack.c.h.b16 %v424
    %v627 = vunpack.c.l.b16 %v425
    %v628 = vunpack.c.h.b16 %v425
    %v629 = vpack.c.b16 %v503, %v501
    %v630 = vpack.c.b16 %v504, %v502
    %v631 = vpack.c.b16 %v507, %v505
    %v632 = vpack.c.b16 %v508, %v506
    %v633 = vpack.c.b16 %v511, %v509
    %v634 = vpack.c.b16 %v512, %v510
    %v635 = vpack.c.b16 %v515, %v513
    %v636 = vpack.c.b16 %v516, %v514
    %v637 = vpack.c.b16 %v519, %v517
    %v638 = vpack.c.b16 %v520, %v518
    %v639 = vpack.c.b16 %v523, %v521
    %v640 = vpack.c.b16 %v524, %v522
    %v641 = vpack.c.b16 %v527, %v525
    %v642 = vpack.c.b16 %v528, %v526
    %v643 = vpack.c.b16 %v531, %v529
    %v644 = vpack.c.b16 %v532, %v530
    %v645 = vpack.c.b16 %v535, %v533
    %v646 = vpack.c.b16 %v536, %v534
    %v647 = vpack.c.b16 %v539, %v537
    %v648 = vpack.c.b16 %v540, %v538
    %v649 = vpack.c.b16 %v543, %v541
    %v650 = vpack.c.b16 %v544, %v542
    %v651 = vpack.c.b16 %v547, %v545
    %v652 = vpack.c.b16 %v548, %v546
    %v653 = vpack.c.b16 %v551, %v549
    %v654 = vpack.c.b16 %v552, %v550
    %v655 = vpack.c.b16 %v555, %v553
    %v656 = vpack.c.b16 %v556, %v554
    %v657 = vpack.c.b16 %v559, %v557
    %v658 = vpack.c.b16 %v560, %v558
    %v659 = vpack.c.b16 %v563, %v561
    %v660 = vpack.c.b16 %v564, %v562
    %v661 = vpack.c.b16 %v567, %v565
    %v662 = vpack.c.b16 %v568, %v566
    %v663 = vpack.c.b16 %v571, %v569
    %v664 = vpack.c.b16 %v572, %v570
    %v665 = vpack.c.b16 %v575, %v573
    %v666 = vpack.c.b16 %v576, %v574
    %v667 = vpack.c.b16 %v579, %v577
    %v668 = vpack.c.b16 %v580, %v578
    %v669 = vpack.c.b16 %v583, %v581
    %v670 = vpack.c.b16 %v584, %v582
    %v671 = vpack.c.b16 %v587, %v585
    %v672 = vpack.c.b16 %v588, %v586
    %v673 = vpack.c.b16 %v591, %v589
    %v674 = vpack.c.b16 %v592, %v590
    %v675 = vpack.c.b16 %v595, %v593
    %v676 = vpack.c.b16 %v596, %v594
    %v677 = vpack.c.b16 %v599, %v597
    %v678 = vpack.c.b16 %v600, %v598
    %v679 = vpack.c.b16 %v603, %v601
    %v680 = vpack.c.b16 %v604, %v602
    %v681 = vpack.c.b16 %v607, %v605
    %v682 = vpack.c.b16 %v608, %v606
    %v683 = vpack.c.b16 %v611, %v609
    %v684 = vpack.c.b16 %v612, %v610
    %v685 = vpack.c.b16 %v615, %v613
    %v686 = vpack.c.b16 %v616, %v614
    %v687 = vpack.c.b16 %v619, %v617
    %v688 = vpack.c.b16 %v620, %v618
    %v689 = vpack.c.b16 %v623, %v621
    %v690 = vpack.c.b16 %v624, %v622
    %v691 = vpack.c.b16 %v627, %v625
    %v692 = vpack.c.b16 %v628, %v626
    %757 = vmatprep.subr.bf16.mxu0 %v630
    %758 = vmatpush1.bf16.msra.mxu0 %v629
    %759 = vmatprep.subr.bf16.mxu0 %v632
    %760 = vmatpush1.bf16.msra.mxu0 %v631
    %761 = vmatprep.subr.bf16.mxu0 %v634
    %762 = vmatpush1.bf16.msra.mxu0 %v633
    %763 = vmatprep.subr.bf16.mxu0 %v636
    %764 = vmatpush1.bf16.msra.mxu0 %v635
    %765 = vmatprep.subr.bf16.mxu0 %v638
    %766 = vmatpush1.bf16.msra.mxu0 %v637
    %767 = vmatprep.subr.bf16.mxu0 %v640
    %768 = vmatpush1.bf16.msra.mxu0 %v639
    %769 = vmatprep.subr.bf16.mxu0 %v642
    %770 = vmatpush1.bf16.msra.mxu0 %v641
    %771 = vmatprep.subr.bf16.mxu0 %v644
    %772 = vmatpush1.bf16.msra.mxu0 %v643
    %773 = vmatprep.subr.bf16.mxu0 %v646
    %774 = vmatpush1.bf16.msra.mxu0 %v645
    %775 = vmatprep.subr.bf16.mxu0 %v648
    %776 = vmatpush1.bf16.msra.mxu0 %v647
    %777 = vmatprep.subr.bf16.mxu0 %v650
    %778 = vmatpush1.bf16.msra.mxu0 %v649
    %779 = vmatprep.subr.bf16.mxu0 %v652
    %780 = vmatpush1.bf16.msra.mxu0 %v651
    %781 = vmatprep.subr.bf16.mxu0 %v654
    %782 = vmatpush1.bf16.msra.mxu0 %v653
    %783 = vmatprep.subr.bf16.mxu0 %v656
    %784 = vmatpush1.bf16.msra.mxu0 %v655
    %785 = vmatprep.subr.bf16.mxu0 %v658
    %786 = vmatpush1.bf16.msra.mxu0 %v657
    %787 = vmatprep.subr.bf16.mxu0 %v660
    %788 = vmatpush1.bf16.msra.mxu0 %v659
    %789 = vmatprep.mubr.bf16.mxu0 %v359
    %790 = vmatmul.mubr.bf16.gmra.mrb[0].mxu0 %v358
    %v791 = vpop.f32.mrb[0].mxu0
    %v792 = vadd.f32 %v430, %v791
    %v793 = vpop.f32.mrb[0].mxu0
    %v794 = vadd.f32 %v434, %v793
    %v795 = vpop.f32.mrb[0].mxu0
    %v796 = vpop.f32.mrb[0].mxu0
    %797 = vdwg.mxu0
    %798 = vmatprep.subr.bf16.mxu0 %v662
    %799 = vmatpush1.bf16.msra.mxu0 %v661
    %800 = vmatprep.subr.bf16.mxu0 %v664
    %801 = vmatpush1.bf16.msra.mxu0 %v663
    %802 = vmatprep.subr.bf16.mxu0 %v666
    %803 = vmatpush1.bf16.msra.mxu0 %v665
    %804 = vmatprep.subr.bf16.mxu0 %v668
    %805 = vmatpush1.bf16.msra.mxu0 %v667
    %806 = vmatprep.subr.bf16.mxu0 %v670
    %807 = vmatpush1.bf16.msra.mxu0 %v669
    %808 = vmatprep.subr.bf16.mxu0 %v672
    %809 = vmatpush1.bf16.msra.mxu0 %v671
    %810 = vmatprep.subr.bf16.mxu0 %v674
    %811 = vmatpush1.bf16.msra.mxu0 %v673
    %812 = vmatprep.subr.bf16.mxu0 %v676
    %813 = vmatpush1.bf16.msra.mxu0 %v675
    %814 = vmatprep.subr.bf16.mxu0 %v678
    %815 = vmatpush1.bf16.msra.mxu0 %v677
    %816 = vmatprep.subr.bf16.mxu0 %v680
    %817 = vmatpush1.bf16.msra.mxu0 %v679
    %818 = vmatprep.subr.bf16.mxu0 %v682
    %819 = vmatpush1.bf16.msra.mxu0 %v681
    %820 = vmatprep.subr.bf16.mxu0 %v684
    %821 = vmatpush1.bf16.msra.mxu0 %v683
    %822 = vmatprep.subr.bf16.mxu0 %v686
    %823 = vmatpush1.bf16.msra.mxu0 %v685
    %824 = vmatprep.subr.bf16.mxu0 %v688
    %825 = vmatpush1.bf16.msra.mxu0 %v687
    %826 = vmatprep.subr.bf16.mxu0 %v690
    %827 = vmatpush1.bf16.msra.mxu0 %v689
    %828 = vmatprep.subr.bf16.mxu0 %v692
    %829 = vmatpush1.bf16.msra.mxu0 %v691
    %830 = vmatprep.mubr.bf16.mxu0 %v361
    %831 = vmatmul.mubr.bf16.gmra.mrb[0].mxu0 %v360
    %v832 = vpop.f32.mrb[0].mxu0
    %v833 = vadd.f32 %v792, %v832
    %v834 = vpop.f32.mrb[0].mxu0
    %v835 = vadd.f32 %v794, %v834
    %v836 = vpop.f32.mrb[0].mxu0
    %v837 = vpop.f32.mrb[0].mxu0
    %838 = vdwg.mxu0
    %v839 = vtanh.pop %v833
    %v840 = vtanh.pop %v835
    %v841 = vadd.f32 %v839, %v840
    %842 = vadd.xlane.f32.xlu0 %v841
    %v843 = vpop.xlane.xlu0 %842
    %v844 = vmul.f32 %v839, %v839
    %v845 = vmul.f32 %v840, %v840
    %v846 = vadd.f32 %v844, %v845
    %847 = vadd.xlane.f32.xlu0 %v846
    %v848 = vpop.xlane.xlu0 %847
    %v849 = vmul.f32 %v843, 0.00390625
    %v850 = vmul.f32 %v848, 0.00390625
    %v851 = vmul.f32 %v849, %v849
    %v852 = vsub.f32 %v850, %v851
    %v853 = vsub.f32 %v839, %v849
    %v854 = vsub.f32 %v840, %v849
    %v855 = vadd.f32 %v852, 1e-05
    %v856 = vrsqrt.pop %v855
    %v857 = vmul.f32 %v853, %v856
    %v858 = vmul.f32 %v854, %v856
    %v860 = vlaneseq
    %v861 = vshrl.u32 %v860, 7
    %v862 = vsub.s32 0, %v861
    %v863 = vrot.slane %v113, %v862
    %v864 = vlaneseq
    %v865 = vshrl.u32 %v864, 7
    %v866 = vsub.s32 1, %v865
    %v867 = vrot.slane %v113, %v866
    %v870 = vmul.f32 %v857, %v863
    %v871 = vmul.f32 %v858, %v867
    %v873 = vlaneseq
    %v874 = vshrl.u32 %v873, 7
    %v875 = vsub.s32 0, %v874
    %v876 = vrot.slane %v115, %v875
    %v877 = vlaneseq
    %v878 = vshrl.u32 %v877, 7
    %v879 = vsub.s32 1, %v878
    %v880 = vrot.slane %v115, %v879
    %v883 = vadd.f32 %v870, %v876
    %v884 = vadd.f32 %v871, %v880
    %v885 = vpack.c.bf16 %v883, %v883
    %v886 = vpack.c.bf16 %v884, %v884
    %v887 = vld [vmem:[#allocation8] sm:$0xf]
    %v888 = vld [vmem:[#allocation8 + $0x4] sm:$0xf]
    %v889 = vld [vmem:[#allocation8 + $0x8] sm:$0xf]
    %v890 = vld [vmem:[#allocation8 + $0xc] sm:$0xf]
    %v891 = vld [vmem:[#allocation8 + $0x10] sm:$0xf]
    %v892 = vld [vmem:[#allocation8 + $0x14] sm:$0xf]
    %v893 = vld [vmem:[#allocation8 + $0x18] sm:$0xf]
    %v894 = vld [vmem:[#allocation8 + $0x1c] sm:$0xf]
    %v895 = vld [vmem:[#allocation8 + $0x20] sm:$0xf]
    %v896 = vld [vmem:[#allocation8 + $0x24] sm:$0xf]
    %v897 = vld [vmem:[#allocation8 + $0x28] sm:$0xf]
    %v898 = vld [vmem:[#allocation8 + $0x2c] sm:$0xf]
    %v899 = vld [vmem:[#allocation8 + $0x30] sm:$0xf]
    %v900 = vld [vmem:[#allocation8 + $0x34] sm:$0xf]
    %v901 = vld [vmem:[#allocation8 + $0x38] sm:$0xf]
    %v902 = vld [vmem:[#allocation8 + $0x3c] sm:$0xf]
    %v903 = vld [vmem:[#allocation8 + $0x40] sm:$0xf]
    %v904 = vld [vmem:[#allocation8 + $0x44] sm:$0xf]
    %v905 = vld [vmem:[#allocation8 + $0x48] sm:$0xf]
    %v906 = vld [vmem:[#allocation8 + $0x4c] sm:$0xf]
    %v907 = vld [vmem:[#allocation8 + $0x50] sm:$0xf]
    %v908 = vld [vmem:[#allocation8 + $0x54] sm:$0xf]
    %v909 = vld [vmem:[#allocation8 + $0x58] sm:$0xf]
    %v910 = vld [vmem:[#allocation8 + $0x5c] sm:$0xf]
    %v911 = vld [vmem:[#allocation8 + $0x60] sm:$0xf]
    %v912 = vld [vmem:[#allocation8 + $0x64] sm:$0xf]
    %v913 = vld [vmem:[#allocation8 + $0x68] sm:$0xf]
    %v914 = vld [vmem:[#allocation8 + $0x6c] sm:$0xf]
    %v915 = vld [vmem:[#allocation8 + $0x70] sm:$0xf]
    %v916 = vld [vmem:[#allocation8 + $0x74] sm:$0xf]
    %v917 = vld [vmem:[#allocation8 + $0x78] sm:$0xf]
    %v918 = vld [vmem:[#allocation8 + $0x7c] sm:$0xf]
    %v951 = vunpack.c.l.b16 %v887
    %v952 = vunpack.c.l.b16 %v888
    %v953 = vunpack.c.l.b16 %v889
    %v954 = vunpack.c.l.b16 %v890
    %v955 = vunpack.c.l.b16 %v891
    %v956 = vunpack.c.l.b16 %v892
    %v957 = vunpack.c.l.b16 %v893
    %v958 = vunpack.c.l.b16 %v894
    %v959 = vunpack.c.l.b16 %v895
    %v960 = vunpack.c.l.b16 %v896
    %v961 = vunpack.c.l.b16 %v897
    %v962 = vunpack.c.l.b16 %v898
    %v963 = vunpack.c.l.b16 %v899
    %v964 = vunpack.c.l.b16 %v900
    %v965 = vunpack.c.l.b16 %v901
    %v966 = vunpack.c.l.b16 %v902
    %v967 = vunpack.c.l.b16 %v903
    %v968 = vunpack.c.l.b16 %v904
    %v969 = vunpack.c.l.b16 %v905
    %v970 = vunpack.c.l.b16 %v906
    %v971 = vunpack.c.l.b16 %v907
    %v972 = vunpack.c.l.b16 %v908
    %v973 = vunpack.c.l.b16 %v909
    %v974 = vunpack.c.l.b16 %v910
    %v975 = vunpack.c.l.b16 %v911
    %v976 = vunpack.c.l.b16 %v912
    %v977 = vunpack.c.l.b16 %v913
    %v978 = vunpack.c.l.b16 %v914
    %v979 = vunpack.c.l.b16 %v915
    %v980 = vunpack.c.l.b16 %v916
    %v981 = vunpack.c.l.b16 %v917
    %v982 = vunpack.c.l.b16 %v918
    %v983 = vpack.c.b16 %v952, %v951
    %v984 = vpack.c.b16 %v954, %v953
    %v985 = vpack.c.b16 %v956, %v955
    %v986 = vpack.c.b16 %v958, %v957
    %v987 = vpack.c.b16 %v960, %v959
    %v988 = vpack.c.b16 %v962, %v961
    %v989 = vpack.c.b16 %v964, %v963
    %v990 = vpack.c.b16 %v966, %v965
    %v991 = vpack.c.b16 %v968, %v967
    %v992 = vpack.c.b16 %v970, %v969
    %v993 = vpack.c.b16 %v972, %v971
    %v994 = vpack.c.b16 %v974, %v973
    %v995 = vpack.c.b16 %v976, %v975
    %v996 = vpack.c.b16 %v978, %v977
    %v997 = vpack.c.b16 %v980, %v979
    %v998 = vpack.c.b16 %v982, %v981
    %1015 = vmatprep.subr.bf16.mxu0 0
    %1016 = vmatpush1.bf16.msra.mxu0 %v983
    %1017 = vmatprep.subr.bf16.mxu0 0
    %1018 = vmatpush1.bf16.msra.mxu0 %v984
    %1019 = vmatprep.subr.bf16.mxu0 0
    %1020 = vmatpush1.bf16.msra.mxu0 %v985
    %1021 = vmatprep.subr.bf16.mxu0 0
    %1022 = vmatpush1.bf16.msra.mxu0 %v986
    %1023 = vmatprep.subr.bf16.mxu0 0
    %1024 = vmatpush1.bf16.msra.mxu0 %v987
    %1025 = vmatprep.subr.bf16.mxu0 0
    %1026 = vmatpush1.bf16.msra.mxu0 %v988
    %1027 = vmatprep.subr.bf16.mxu0 0
    %1028 = vmatpush1.bf16.msra.mxu0 %v989
    %1029 = vmatprep.subr.bf16.mxu0 0
    %1030 = vmatpush1.bf16.msra.mxu0 %v990
    %1031 = vmatprep.subr.bf16.mxu0 0
    %1032 = vmatpush1.bf16.msra.mxu0 %v991
    %1033 = vmatprep.subr.bf16.mxu0 0
    %1034 = vmatpush1.bf16.msra.mxu0 %v992
    %1035 = vmatprep.subr.bf16.mxu0 0
    %1036 = vmatpush1.bf16.msra.mxu0 %v993
    %1037 = vmatprep.subr.bf16.mxu0 0
    %1038 = vmatpush1.bf16.msra.mxu0 %v994
    %1039 = vmatprep.subr.bf16.mxu0 0
    %1040 = vmatpush1.bf16.msra.mxu0 %v995
    %1041 = vmatprep.subr.bf16.mxu0 0
    %1042 = vmatpush1.bf16.msra.mxu0 %v996
    %1043 = vmatprep.subr.bf16.mxu0 0
    %1044 = vmatpush1.bf16.msra.mxu0 %v997
    %1045 = vmatprep.subr.bf16.mxu0 0
    %1046 = vmatpush1.bf16.msra.mxu0 %v998
    %1047 = vmatprep.mubr.bf16.mxu0 %v886
    %1048 = vmatmul.mubr.bf16.gmra.mrb[0].mxu0 %v885
    %v1049 = vpop.f32.mrb[0].mxu0
    %v1050 = vadd.f32 %v116, %v1049
    %v1051 = vpop.f32.mrb[0].mxu0
    %v1052 = vpop.f32.mrb[0].mxu0
    %v1053 = vpop.f32.mrb[0].mxu0
    %1054 = vdwg.mxu0
    %v1055 = vtanh.pop %v1050
    %1056 = vadd.xlane.f32.xlu0 %v1055
    %v1057 = vpop.xlane.xlu0 %1056
    %v1058 = vmul.f32 %v1055, %v1055
    %1059 = vadd.xlane.f32.xlu0 %v1058
    %v1060 = vpop.xlane.xlu0 %1059
    %v1061 = vmul.f32 %v1057, 0.0078125
    %v1062 = vmul.f32 %v1060, 0.0078125
    %v1063 = vmul.f32 %v1061, %v1061
    %v1064 = vsub.f32 %v1062, %v1063
    %v1065 = vsub.f32 %v1055, %v1061
    %v1066 = vadd.f32 %v1064, 1e-05
    %v1067 = vrsqrt.pop %v1066
    %v1068 = vmul.f32 %v1065, %v1067
    %v1069 = vmul.f32 %v1068, %v117
    %v1070 = vadd.f32 %v1069, %v118
    %v1071 = vpack.c.bf16 %v1070, %v1070
    %v1072 = vld [vmem:[#allocation10] sm:$0xf]
    %v1073 = vld [vmem:[#allocation10 + $0x4] sm:$0xf]
    %v1074 = vld [vmem:[#allocation10 + $0x8] sm:$0xf]
    %v1075 = vld [vmem:[#allocation10 + $0xc] sm:$0xf]
    %v1076 = vld [vmem:[#allocation10 + $0x10] sm:$0xf]
    %v1077 = vld [vmem:[#allocation10 + $0x14] sm:$0xf]
    %v1078 = vld [vmem:[#allocation10 + $0x18] sm:$0xf]
    %v1079 = vld [vmem:[#allocation10 + $0x1c] sm:$0xf]
    %v1080 = vld [vmem:[#allocation10 + $0x20] sm:$0xf]
    %v1081 = vld [vmem:[#allocation10 + $0x24] sm:$0xf]
    %v1082 = vld [vmem:[#allocation10 + $0x28] sm:$0xf]
    %v1083 = vld [vmem:[#allocation10 + $0x2c] sm:$0xf]
    %v1084 = vld [vmem:[#allocation10 + $0x30] sm:$0xf]
    %v1085 = vld [vmem:[#allocation10 + $0x34] sm:$0xf]
    %v1086 = vld [vmem:[#allocation10 + $0x38] sm:$0xf]
    %v1087 = vld [vmem:[#allocation10 + $0x3c] sm:$0xf]
    %v1104 = vunpack.c.l.b16 %v1072
    %v1105 = vunpack.c.l.b16 %v1073
    %v1106 = vunpack.c.l.b16 %v1074
    %v1107 = vunpack.c.l.b16 %v1075
    %v1108 = vunpack.c.l.b16 %v1076
    %v1109 = vunpack.c.l.b16 %v1077
    %v1110 = vunpack.c.l.b16 %v1078
    %v1111 = vunpack.c.l.b16 %v1079
    %v1112 = vunpack.c.l.b16 %v1080
    %v1113 = vunpack.c.l.b16 %v1081
    %v1114 = vunpack.c.l.b16 %v1082
    %v1115 = vunpack.c.l.b16 %v1083
    %v1116 = vunpack.c.l.b16 %v1084
    %v1117 = vunpack.c.l.b16 %v1085
    %v1118 = vunpack.c.l.b16 %v1086
    %v1119 = vunpack.c.l.b16 %v1087
    %v1120 = vpack.c.b16 %v1105, %v1104
    %v1121 = vpack.c.b16 %v1107, %v1106
    %v1122 = vpack.c.b16 %v1109, %v1108
    %v1123 = vpack.c.b16 %v1111, %v1110
    %v1124 = vpack.c.b16 %v1113, %v1112
    %v1125 = vpack.c.b16 %v1115, %v1114
    %v1126 = vpack.c.b16 %v1117, %v1116
    %v1127 = vpack.c.b16 %v1119, %v1118
    %1136 = vmatprep.subr.bf16.mxu0 0
    %1137 = vmatpush1.bf16.msra.mxu0 %v1120
    %1138 = vmatprep.subr.bf16.mxu0 0
    %1139 = vmatpush1.bf16.msra.mxu0 %v1121
    %1140 = vmatprep.subr.bf16.mxu0 0
    %1141 = vmatpush1.bf16.msra.mxu0 %v1122
    %1142 = vmatprep.subr.bf16.mxu0 0
    %1143 = vmatpush1.bf16.msra.mxu0 %v1123
    %1144 = vmatprep.subr.bf16.mxu0 0
    %1145 = vmatpush1.bf16.msra.mxu0 %v1124
    %1146 = vmatprep.subr.bf16.mxu0 0
    %1147 = vmatpush1.bf16.msra.mxu0 %v1125
    %1148 = vmatprep.subr.bf16.mxu0 0
    %1149 = vmatpush1.bf16.msra.mxu0 %v1126
    %1150 = vmatprep.subr.bf16.mxu0 0
    %1151 = vmatpush1.bf16.msra.mxu0 %v1127
    %1152 = vmatprep.subr.bf16.mxu0 0
    %1153 = vmatpush1.bf16.msra.mxu0 0
    %1154 = vmatprep.subr.bf16.mxu0 0
    %1155 = vmatpush1.bf16.msra.mxu0 0
    %1156 = vmatprep.subr.bf16.mxu0 0
    %1157 = vmatpush1.bf16.msra.mxu0 0
    %1158 = vmatprep.subr.bf16.mxu0 0
    %1159 = vmatpush1.bf16.msra.mxu0 0
    %1160 = vmatprep.subr.bf16.mxu0 0
    %1161 = vmatpush1.bf16.msra.mxu0 0
    %1162 = vmatprep.subr.bf16.mxu0 0
    %1163 = vmatpush1.bf16.msra.mxu0 0
    %1164 = vmatprep.subr.bf16.mxu0 0
    %1165 = vmatpush1.bf16.msra.mxu0 0
    %1166 = vmatprep.subr.bf16.mxu0 0
    %1167 = vmatpush1.bf16.msra.mxu0 0
    %1168 = vmatprep.mubr.bf16.mxu0 0
    %1169 = vmatmul.mubr.bf16.gmra.mrb[0].mxu0 %v1071
    %v1170 = vpop.f32.mrb[0].mxu0
    %v1171 = vadd.f32 %v119, %v1170
    %v1172 = vpop.f32.mrb[0].mxu0
    %v1173 = vpop.f32.mrb[0].mxu0
    %v1174 = vpop.f32.mrb[0].mxu0
    %1175 = vdwg.mxu0
    %1176 = vst [vmem:[#allocation13] sm:$0xff] %v1171
    // Predicated region
    $region50: #{tpu_custom_call.1} parent=1 // pred_check
      _
    $region51: #{tpu_custom_call.1} parent=1 // pred_check_branch
      %1178 = sbr.rel (0) target = $region53
    $region52: #{tpu_custom_call.1} parent=1 // pred_region
      %s1180 = ssub.s32 128, 128
      %1181 = vsyncadd [#allocation4], %s1180
      %s1183 = sshll.u32 [#allocation13], 4
      %s1184 = int_to_ptr.vmem [resolvable:$true] %s1183
      %1186 = dma.vmem_to_hbm [thread:$0]  %s1184, 128, %s6, [#allocation4]
    $region53: #{tpu_custom_call.1} parent=1 // pred_fallthru
      _
    // Predicated region
    $region54: #{tpu_custom_call.1} parent=1 // pred_check
      _
    $region55: #{tpu_custom_call.1} parent=1 // pred_check_branch
      %1188 = sbr.rel (0) target = $region57
    $region56: #{tpu_custom_call.1} parent=1 // pred_region
      %1189 = dma.done [#allocation4], 128
    $region57: #{tpu_custom_call.1} parent=1 // pred_fallthru
      _
    %1190 = vsyncpa [#allocation3], 1
    %1191 = vsyncpa [#allocation6], 1
    %1192 = vsyncpa [#allocation9], 1
    %1193 = vsyncpa [#allocation12], 1
    %1194 = vsyncpa [#allocation4], 1

// kernel: tpu_custom_call.1
$region0: #{tpu_custom_call.1}
  #allocation0 [shape = 'u32[]', space=smem, size = 0x4, offset = 0x4, fixed_abs, tag = 'smem constant byte address 0x4 - core index']
  #allocation1 [shape = 'u32[144,128]{1,0:T(1,128)}', space=vmem, size = 0x12000, scoped, tag = 'internal scratch']
  %s0 = inlined_call_operand.hbm [shape: bf16[8,32], index: 0, kind: input, shape index: {}]
  %s1 = inlined_call_operand.hbm [shape: bf16[32,512], index: 1, kind: input, shape index: {}]
  %s2 = inlined_call_operand.hbm [shape: bf16[512,256], index: 2, kind: input, shape index: {}]
  %s3 = inlined_call_operand.hbm [shape: bf16[256,128], index: 3, kind: input, shape index: {}]
  %s4 = inlined_call_operand.hbm [shape: bf16[128,128], index: 4, kind: input, shape index: {}]
  %s5 = inlined_call_operand.hbm [shape: f32[16,512], index: 5, kind: input, shape index: {}]
  %s6 = inlined_call_operand.hbm [shape: f32[8,128], index: 6, kind: output, shape index: {}]
  %s7 = sld [smem:[#allocation0]]
  $region58: #{tpu_custom_call.1} parent=0
    _
  %s9 = ssub.s32 1, %s7
  %s10 = scalar_select 0, %s9, %s7
  $region1: #{tpu_custom_call.1} parent=0
    #allocation2 [shape = 'u8[2048]{0}', space=vmem, size = 0x800, scoped, tag = 'input window, operand 0, single buffered']
    #allocation3 [shape = 's32[1]{0}', space=sflag, size = 0x4, scoped, tag = 'scoped memory for tpu_custom_call.1']
    #allocation4 [shape = 's32[1]{0}', space=sflag, size = 0x4, scoped, tag = 'scoped memory for tpu_custom_call.1']
    #allocation5 [shape = 'u8[32768]{0}', space=vmem, size = 0x8000, scoped, tag = 'input window, operand 1, single buffered']
    #allocation6 [shape = 's32[1]{0}', space=sflag, size = 0x4, scoped, tag = 'scoped memory for tpu_custom_call.1']
    #allocation7 [shape = 'u8[262144]{0}', space=vmem, size = 0x40000, scoped, tag = 'input window, operand 2, single buffered']
    #allocation8 [shape = 'u8[65536]{0}', space=vmem, size = 0x10000, scoped, tag = 'input window, operand 3, single buffered']
    #allocation9 [shape = 's32[1]{0}', space=sflag, size = 0x4, scoped, tag = 'scoped memory for tpu_custom_call.1']
    #allocation10 [shape = 'u8[32768]{0}', space=vmem, size = 0x8000, scoped, tag = 'input window, operand 4, single buffered']
    #allocation11 [shape = 'u8[32768]{0}', space=vmem, size = 0x8000, scoped, tag = 'input window, operand 5, single buffered']
    #allocation12 [shape = 's32[1]{0}', space=sflag, size = 0x4, scoped, tag = 'scoped memory for tpu_custom_call.1']
    #allocation13 [shape = 'u8[4096]{0}', space=vmem, size = 0x1000, scoped, tag = 'output window, operand 0, single buffered']
    %11 = vsyncpa [#allocation3], 0
    %12 = vsyncpa [#allocation6], 0
    %13 = vsyncpa [#allocation9], 0
    %14 = vsyncpa [#allocation12], 0
    %15 = vsyncpa [#allocation4], 0
    // Predicated region
    $region2: #{tpu_custom_call.1} parent=1 // pred_check
      _
    $region3: #{tpu_custom_call.1} parent=1 // pred_check_branch
      %17 = sbr.rel (0) target = $region5
    $region4: #{tpu_custom_call.1} parent=1 // pred_region
      %s19 = ssub.s32 64, 64
      %20 = vsyncadd [#allocation3], %s19
      %s22 = sshll.u32 [#allocation2], 4
      %s23 = int_to_ptr.vmem [resolvable:$true] %s22
      %25 = dma.hbm_to_vmem [thread:$0]  %s0, 64, %s23, [#allocation3]
    $region5: #{tpu_custom_call.1} parent=1 // pred_fallthru
      _
    // Predicated region
    $region6: #{tpu_custom_call.1} parent=1 // pred_check
      _
    $region7: #{tpu_custom_call.1} parent=1 // pred_check_branch
      %27 = sbr.rel (0) target = $region9
    $region8: #{tpu_custom_call.1} parent=1 // pred_region
      %s29 = ssub.s32 1024, 1024
      %30 = vsyncadd [#allocation6], %s29
      %s31 = sshll.u32 [#allocation5], 4
      %s32 = int_to_ptr.vmem [resolvable:$true] %s31
      %37 = dma.hbm_to_vmem [thread:$0]  %s1, 1024, %s32, [#allocation6], 256, 256, 16
    $region9: #{tpu_custom_call.1} parent=1 // pred_fallthru
      _
    // Predicated region
    $region10: #{tpu_custom_call.1} parent=1 // pred_check
      _
    $region11: #{tpu_custom_call.1} parent=1 // pred_check_branch
      %39 = sbr.rel (0) target = $region13
    $region12: #{tpu_custom_call.1} parent=1 // pred_region
      %s41 = ssub.s32 8192, 8192
      %42 = vsyncadd [#allocation6], %s41
      %s43 = sshll.u32 [#allocation7], 4
      %s44 = int_to_ptr.vmem [resolvable:$true] %s43
      %49 = dma.hbm_to_vmem [thread:$0]  %s2, 8192, %s44, [#allocation6], 128, 128, 8
    $region13: #{tpu_custom_call.1} parent=1 // pred_fallthru
      _
    // Predicated region
    $region14: #{tpu_custom_call.1} parent=1 // pred_check
      _
    $region15: #{tpu_custom_call.1} parent=1 // pred_check_branch
      %51 = sbr.rel (0) target = $region17
    $region16: #{tpu_custom_call.1} parent=1 // pred_region
      %s53 = ssub.s32 2048, 2048
      %54 = vsyncadd [#allocation9], %s53
      %s55 = sshll.u32 [#allocation8], 4
      %s56 = int_to_ptr.vmem [resolvable:$true] %s55
      %61 = dma.hbm_to_vmem [thread:$0]  %s3, 2048, %s56, [#allocation9], 64, 64, 4
    $region17: #{tpu_custom_call.1} parent=1 // pred_fallthru
      _
    // Predicated region
    $region18: #{tpu_custom_call.1} parent=1 // pred_check
      _
    $region19: #{tpu_custom_call.1} parent=1 // pred_check_branch
      %63 = sbr.rel (0) target = $region21
    $region20: #{tpu_custom_call.1} parent=1 // pred_region
      %s65 = ssub.s32 1024, 1024
      %66 = vsyncadd [#allocation9], %s65
      %s67 = sshll.u32 [#allocation10], 4
      %s68 = int_to_ptr.vmem [resolvable:$true] %s67
      %73 = dma.hbm_to_vmem [thread:$0]  %s4, 1024, %s68, [#allocation9], 64, 64, 4
    $region21: #{tpu_custom_call.1} parent=1 // pred_fallthru
      _
    // Predicated region
    $region22: #{tpu_custom_call.1} parent=1 // pred_check
      _
    $region23: #{tpu_custom_call.1} parent=1 // pred_check_branch
      %75 = sbr.rel (0) target = $region25
    $region24: #{tpu_custom_call.1} parent=1 // pred_region
      %s77 = ssub.s32 1024, 1024
      %78 = vsyncadd [#allocation12], %s77
      %s79 = sshll.u32 [#allocation11], 4
      %s80 = int_to_ptr.vmem [resolvable:$true] %s79
      %85 = dma.hbm_to_vmem [thread:$0]  %s5, 1024, %s80, [#allocation12], 512, 512, 32
    $region25: #{tpu_custom_call.1} parent=1 // pred_fallthru
      _
    // Predicated region
    $region26: #{tpu_custom_call.1} parent=1 // pred_check
      _
    $region27: #{tpu_custom_call.1} parent=1 // pred_check_branch
      %87 = sbr.rel (0) target = $region29
    $region28: #{tpu_custom_call.1} parent=1 // pred_region
      %88 = dma.done [#allocation3], 64
    $region29: #{tpu_custom_call.1} parent=1 // pred_fallthru
      _
    // Predicated region
    $region30: #{tpu_custom_call.1} parent=1 // pred_check
      _
    $region31: #{tpu_custom_call.1} parent=1 // pred_check_branch
      %90 = sbr.rel (0) target = $region33
    $region32: #{tpu_custom_call.1} parent=1 // pred_region
      %91 = dma.done [#allocation6], 1024
    $region33: #{tpu_custom_call.1} parent=1 // pred_fallthru
      _
    // Predicated region
    $region34: #{tpu_custom_call.1} parent=1 // pred_check
      _
    $region35: #{tpu_custom_call.1} parent=1 // pred_check_branch
      %93 = sbr.rel (0) target = $region37
    $region36: #{tpu_custom_call.1} parent=1 // pred_region
      %94 = dma.done [#allocation6], 8192
    $region37: #{tpu_custom_call.1} parent=1 // pred_fallthru
      _
    // Predicated region
    $region38: #{tpu_custom_call.1} parent=1 // pred_check
      _
    $region39: #{tpu_custom_call.1} parent=1 // pred_check_branch
      %96 = sbr.rel (0) target = $region41
    $region40: #{tpu_custom_call.1} parent=1 // pred_region
      %97 = dma.done [#allocation9], 2048
    $region41: #{tpu_custom_call.1} parent=1 // pred_fallthru
      _
    // Predicated region
    $region42: #{tpu_custom_call.1} parent=1 // pred_check
      _
    $region43: #{tpu_custom_call.1} parent=1 // pred_check_branch
      %99 = sbr.rel (0) target = $region45
    $region44: #{tpu_custom_call.1} parent=1 // pred_region
      %100 = dma.done [#allocation9], 1024
    $region45: #{tpu_custom_call.1} parent=1 // pred_fallthru
      _
    // Predicated region
    $region46: #{tpu_custom_call.1} parent=1 // pred_check
      _
    $region47: #{tpu_custom_call.1} parent=1 // pred_check_branch
      %102 = sbr.rel (0) target = $region49
    $region48: #{tpu_custom_call.1} parent=1 // pred_region
      %103 = dma.done [#allocation12], 1024
    $region49: #{tpu_custom_call.1} parent=1 // pred_fallthru
      _
    %v105 = vld [vmem:[#allocation11] ss:$8 sm:$0xf]
    %s106 = scalar_lea.vmem [#allocation11], 1
    %v107 = vld [vmem:[%s106] ss:$8 sm:$0xf]
    %s108 = scalar_lea.vmem [#allocation11], 2
    %v109 = vld [vmem:[%s108] ss:$8 sm:$0xf]
    %s110 = scalar_lea.vmem [#allocation11], 3
    %v111 = vld [vmem:[%s110] ss:$8 sm:$0x3]
    %s112 = scalar_lea.vmem [#allocation11], 4
    %v113 = vld [vmem:[%s112] ss:$8 sm:$0x3]
    %s114 = scalar_lea.vmem [#allocation11], 5
    %v115 = vld [vmem:[%s114] ss:$8 sm:$0x3]
    %v116 = vld [vmem:[#allocation11 + $0x6] ss:$0 sm:$0xff]
    %v117 = vld [vmem:[#allocation11 + $0x7] ss:$0 sm:$0xff]
    %v118 = vld [vmem:[#allocation11 + $0x20] ss:$0 sm:$0xff]
    %v119 = vld [vmem:[#allocation11 + $0x21] ss:$0 sm:$0xff]
    %v120 = vld [vmem:[#allocation2] sm:$0xf]
    %v121 = vld [vmem:[#allocation5] sm:$0xff]
    %v122 = vld [vmem:[#allocation5 + $0x8] sm:$0xff]
    %v123 = vld [vmem:[#allocation5 + $0x10] sm:$0xff]
    %v124 = vld [vmem:[#allocation5 + $0x18] sm:$0xff]
    %v125 = vld [vmem:[#allocation5 + $0x20] sm:$0xff]
    %v126 = vld [vmem:[#allocation5 + $0x28] sm:$0xff]
    %v127 = vld [vmem:[#allocation5 + $0x30] sm:$0xff]
    %v128 = vld [vmem:[#allocation5 + $0x38] sm:$0xff]
    %v130 = vlaneseq
    %v131 = vshrl.u32 %v130, 7
    %v132 = vsub.s32 0, %v131
    %v133 = vrot.slane %v105, %v132
    %v134 = vlaneseq
    %v135 = vshrl.u32 %v134, 7
    %v136 = vsub.s32 1, %v135
    %v137 = vrot.slane %v105, %v136
    %v138 = vlaneseq
    %v139 = vshrl.u32 %v138, 7
    %v140 = vsub.s32 2, %v139
    %v141 = vrot.slane %v105, %v140
    %v142 = vlaneseq
    %v143 = vshrl.u32 %v142, 7
    %v144 = vsub.s32 3, %v143
    %v145 = vrot.slane %v105, %v144
    %v158 = vunpack.c.l.b16 %v121
    %v159 = vunpack.c.h.b16 %v121
    %v160 = vunpack.c.l.b16 %v122
    %v161 = vunpack.c.h.b16 %v122
    %v162 = vunpack.c.l.b16 %v123
    %v163 = vunpack.c.h.b16 %v123
    %v164 = vunpack.c.l.b16 %v124
    %v165 = vunpack.c.h.b16 %v124
    %v166 = vunpack.c.l.b16 %v125
    %v167 = vunpack.c.h.b16 %v125
    %v168 = vunpack.c.l.b16 %v126
    %v169 = vunpack.c.h.b16 %v126
    %v170 = vunpack.c.l.b16 %v127
    %v171 = vunpack.c.h.b16 %v127
    %v172 = vunpack.c.l.b16 %v128
    %v173 = vunpack.c.h.b16 %v128
    %v174 = vpack.c.b16 %v162, %v158
    %v175 = vpack.c.b16 %v163, %v159
    %v176 = vpack.c.b16 %v164, %v160
    %v177 = vpack.c.b16 %v165, %v161
    %v178 = vpack.c.b16 %v170, %v166
    %v179 = vpack.c.b16 %v171, %v167
    %v180 = vpack.c.b16 %v172, %v168
    %v181 = vpack.c.b16 %v173, %v169
    %vm190 = vcmask 261120
    %v192 = vsel %vm190, %v120, 0
    %194 = vmatprep.subr.bf16.mxu0 %v175
    %195 = vmatpush1.bf16.msra.mxu0 %v174
    %196 = vmatprep.subr.bf16.mxu0 %v179
    %197 = vmatpush1.bf16.msra.mxu0 %v178
    %198 = vmatprep.subr.bf16.mxu0 0
    %199 = vmatpush1.bf16.msra.mxu0 0
    %200 = vmatprep.subr.bf16.mxu0 0
    %201 = vmatpush1.bf16.msra.mxu0 0
    %202 = vmatprep.subr.bf16.mxu0 0
    %203 = vmatpush1.bf16.msra.mxu0 0
    %204 = vmatprep.subr.bf16.mxu0 0
    %205 = vmatpush1.bf16.msra.mxu0 0
    %206 = vmatprep.subr.bf16.mxu0 0
    %207 = vmatpush1.bf16.msra.mxu0 0
    %208 = vmatprep.subr.bf16.mxu0 0
    %209 = vmatpush1.bf16.msra.mxu0 0
    %210 = vmatprep.subr.bf16.mxu0 0
    %211 = vmatpush1.bf16.msra.mxu0 0
    %212 = vmatprep.subr.bf16.mxu0 0
    %213 = vmatpush1.bf16.msra.mxu0 0
    %214 = vmatprep.subr.bf16.mxu0 0
    %215 = vmatpush1.bf16.msra.mxu0 0
    %216 = vmatprep.subr.bf16.mxu0 0
    %217 = vmatpush1.bf16.msra.mxu0 0
    %218 = vmatprep.subr.bf16.mxu0 0
    %219 = vmatpush1.bf16.msra.mxu0 0
    %220 = vmatprep.subr.bf16.mxu0 0
    %221 = vmatpush1.bf16.msra.mxu0 0
    %222 = vmatprep.subr.bf16.mxu0 0
    %223 = vmatpush1.bf16.msra.mxu0 0
    %224 = vmatprep.subr.bf16.mxu0 0
    %225 = vmatpush1.bf16.msra.mxu0 0
    %226 = vmatprep.mubr.bf16.mxu0 0
    %227 = vmatmul.mubr.bf16.gmra.mrb[0].mxu0 %v192
    %v228 = vpop.f32.mrb[0].mxu0
    %v229 = vadd.f32 %v133, %v228
    %v230 = vpop.f32.mrb[0].mxu0
    %v231 = vadd.f32 %v137, %v230
    %v232 = vpop.f32.mrb[0].mxu0
    %v233 = vpop.f32.mrb[0].mxu0
    %234 = vdwg.mxu0
    %235 = vmatprep.subr.bf16.mxu0 %v177
    %236 = vmatpush1.bf16.msra.mxu0 %v176
    %237 = vmatprep.subr.bf16.mxu0 %v181
    %238 = vmatpush1.bf16.msra.mxu0 %v180
    %239 = vmatprep.subr.bf16.mxu0 0
    %240 = vmatpush1.bf16.msra.mxu0 0
    %241 = vmatprep.subr.bf16.mxu0 0
    %242 = vmatpush1.bf16.msra.mxu0 0
    %243 = vmatprep.subr.bf16.mxu0 0
    %244 = vmatpush1.bf16.msra.mxu0 0
    %245 = vmatprep.subr.bf16.mxu0 0
    %246 = vmatpush1.bf16.msra.mxu0 0
    %247 = vmatprep.subr.bf16.mxu0 0
    %248 = vmatpush1.bf16.msra.mxu0 0
    %249 = vmatprep.subr.bf16.mxu0 0
    %250 = vmatpush1.bf16.msra.mxu0 0
    %251 = vmatprep.subr.bf16.mxu0 0
    %252 = vmatpush1.bf16.msra.mxu0 0
    %253 = vmatprep.subr.bf16.mxu0 0
    %254 = vmatpush1.bf16.msra.mxu0 0
    %255 = vmatprep.subr.bf16.mxu0 0
    %256 = vmatpush1.bf16.msra.mxu0 0
    %257 = vmatprep.subr.bf16.mxu0 0
    %258 = vmatpush1.bf16.msra.mxu0 0
    %259 = vmatprep.subr.bf16.mxu0 0
    %260 = vmatpush1.bf16.msra.mxu0 0
    %261 = vmatprep.subr.bf16.mxu0 0
    %262 = vmatpush1.bf16.msra.mxu0 0
    %263 = vmatprep.subr.bf16.mxu0 0
    %264 = vmatpush1.bf16.msra.mxu0 0
    %265 = vmatprep.subr.bf16.mxu0 0
    %266 = vmatpush1.bf16.msra.mxu0 0
    %267 = vmatprep.mubr.bf16.mxu0 0
    %268 = vmatmul.mubr.bf16.gmra.mrb[0].mxu0 %v192
    %v269 = vpop.f32.mrb[0].mxu0
    %v270 = vadd.f32 %v141, %v269
    %v271 = vpop.f32.mrb[0].mxu0
    %v272 = vadd.f32 %v145, %v271
    %v273 = vpop.f32.mrb[0].mxu0
    %v274 = vpop.f32.mrb[0].mxu0
    %275 = vdwg.mxu0
    %v276 = vtanh.pop %v229
    %v277 = vtanh.pop %v231
    %v278 = vtanh.pop %v270
    %v279 = vtanh.pop %v272
    %v280 = vadd.f32 %v276, %v277
    %v281 = vadd.f32 %v280, %v278
    %v282 = vadd.f32 %v281, %v279
    %283 = vadd.xlane.f32.xlu0 %v282
    %v284 = vpop.xlane.xlu0 %283
    %v285 = vmul.f32 %v276, %v276
    %v286 = vmul.f32 %v277, %v277
    %v287 = vmul.f32 %v278, %v278
    %v288 = vmul.f32 %v279, %v279
    %v289 = vadd.f32 %v285, %v286
    %v290 = vadd.f32 %v289, %v287
    %v291 = vadd.f32 %v290, %v288
    %292 = vadd.xlane.f32.xlu0 %v291
    %v293 = vpop.xlane.xlu0 %292
    %v294 = vmul.f32 %v284, 0.001953125
    %v295 = vmul.f32 %v293, 0.001953125
    %v296 = vmul.f32 %v294, %v294
    %v297 = vsub.f32 %v295, %v296
    %v298 = vsub.f32 %v276, %v294
    %v299 = vsub.f32 %v277, %v294
    %v300 = vsub.f32 %v278, %v294
    %v301 = vsub.f32 %v279, %v294
    %v302 = vadd.f32 %v297, 1e-05
    %v303 = vrsqrt.pop %v302
    %v304 = vmul.f32 %v298, %v303
    %v305 = vmul.f32 %v299, %v303
    %v306 = vmul.f32 %v300, %v303
    %v307 = vmul.f32 %v301, %v303
    %v309 = vlaneseq
    %v310 = vshrl.u32 %v309, 7
    %v311 = vsub.s32 0, %v310
    %v312 = vrot.slane %v107, %v311
    %v313 = vlaneseq
    %v314 = vshrl.u32 %v313, 7
    %v315 = vsub.s32 1, %v314
    %v316 = vrot.slane %v107, %v315
    %v317 = vlaneseq
    %v318 = vshrl.u32 %v317, 7
    %v319 = vsub.s32 2, %v318
    %v320 = vrot.slane %v107, %v319
    %v321 = vlaneseq
    %v322 = vshrl.u32 %v321, 7
    %v323 = vsub.s32 3, %v322
    %v324 = vrot.slane %v107, %v323
    %v329 = vmul.f32 %v304, %v312
    %v330 = vmul.f32 %v305, %v316
    %v331 = vmul.f32 %v306, %v320
    %v332 = vmul.f32 %v307, %v324
    %v334 = vlaneseq
    %v335 = vshrl.u32 %v334, 7
    %v336 = vsub.s32 0, %v335
    %v337 = vrot.slane %v109, %v336
    %v338 = vlaneseq
    %v339 = vshrl.u32 %v338, 7
    %v340 = vsub.s32 1, %v339
    %v341 = vrot.slane %v109, %v340
    %v342 = vlaneseq
    %v343 = vshrl.u32 %v342, 7
    %v344 = vsub.s32 2, %v343
    %v345 = vrot.slane %v109, %v344
    %v346 = vlaneseq
    %v347 = vshrl.u32 %v346, 7
    %v348 = vsub.s32 3, %v347
    %v349 = vrot.slane %v109, %v348
    %v354 = vadd.f32 %v329, %v337
    %v355 = vadd.f32 %v330, %v341
    %v356 = vadd.f32 %v331, %v345
    %v357 = vadd.f32 %v332, %v349
    %v358 = vpack.c.bf16 %v354, %v354
    %v359 = vpack.c.bf16 %v355, %v355
    %v360 = vpack.c.bf16 %v356, %v356
    %v361 = vpack.c.bf16 %v357, %v357
    %v362 = vld [vmem:[#allocation7] sm:$0xff]
    %v363 = vld [vmem:[#allocation7 + $0x8] sm:$0xff]
    %v364 = vld [vmem:[#allocation7 + $0x10] sm:$0xff]
    %v365 = vld [vmem:[#allocation7 + $0x18] sm:$0xff]
    %v366 = vld [vmem:[#allocation7 + $0x20] sm:$0xff]
    %v367 = vld [vmem:[#allocation7 + $0x28] sm:$0xff]
    %v368 = vld [vmem:[#allocation7 + $0x30] sm:$0xff]
    %v369 = vld [vmem:[#allocation7 + $0x38] sm:$0xff]
    %v370 = vld [vmem:[#allocation7 + $0x40] sm:$0xff]
    %v371 = vld [vmem:[#allocation7 + $0x48] sm:$0xff]
    %v372 = vld [vmem:[#allocation7 + $0x50] sm:$0xff]
    %v373 = vld [vmem:[#allocation7 + $0x58] sm:$0xff]
    %v374 = vld [vmem:[#allocation7 + $0x60] sm:$0xff]
    %v375 = vld [vmem:[#allocation7 + $0x68] sm:$0xff]
    %v376 = vld [vmem:[#allocation7 + $0x70] sm:$0xff]
    %v377 = vld [vmem:[#allocation7 + $0x78] sm:$0xff]
    %v378 = vld [vmem:[#allocation7 + $0x80] sm:$0xff]
    %v379 = vld [vmem:[#allocation7 + $0x88] sm:$0xff]
    %v380 = vld [vmem:[#allocation7 + $0x90] sm:$0xff]
    %v381 = vld [vmem:[#allocation7 + $0x98] sm:$0xff]
    %v382 = vld [vmem:[#allocation7 + $0xa0] sm:$0xff]
    %v383 = vld [vmem:[#allocation7 + $0xa8] sm:$0xff]
    %v384 = vld [vmem:[#allocation7 + $0xb0] sm:$0xff]
    %v385 = vld [vmem:[#allocation7 + $0xb8] sm:$0xff]
    %v386 = vld [vmem:[#allocation7 + $0xc0] sm:$0xff]
    %v387 = vld [vmem:[#allocation7 + $0xc8] sm:$0xff]
    %v388 = vld [vmem:[#allocation7 + $0xd0] sm:$0xff]
    %v389 = vld [vmem:[#allocation7 + $0xd8] sm:$0xff]
    %v390 = vld [vmem:[#allocation7 + $0xe0] sm:$0xff]
    %v391 = vld [vmem:[#allocation7 + $0xe8] sm:$0xff]
    %v392 = vld [vmem:[#allocation7 + $0xf0] sm:$0xff]
    %v393 = vld [vmem:[#allocation7 + $0xf8] sm:$0xff]
    %v394 = vld [vmem:[#allocation7 + $0x100] sm:$0xff]
    %v395 = vld [vmem:[#allocation7 + $0x108] sm:$0xff]
    %v396 = vld [vmem:[#allocation7 + $0x110] sm:$0xff]
    %v397 = vld [vmem:[#allocation7 + $0x118] sm:$0xff]
    %v398 = vld [vmem:[#allocation7 + $0x120] sm:$0xff]
    %v399 = vld [vmem:[#allocation7 + $0x128] sm:$0xff]
    %v400 = vld [vmem:[#allocation7 + $0x130] sm:$0xff]
    %v401 = vld [vmem:[#allocation7 + $0x138] sm:$0xff]
    %v402 = vld [vmem:[#allocation7 + $0x140] sm:$0xff]
    %v403 = vld [vmem:[#allocation7 + $0x148] sm:$0xff]
    %v404 = vld [vmem:[#allocation7 + $0x150] sm:$0xff]
    %v405 = vld [vmem:[#allocation7 + $0x158] sm:$0xff]
    %v406 = vld [vmem:[#allocation7 + $0x160] sm:$0xff]
    %v407 = vld [vmem:[#allocation7 + $0x168] sm:$0xff]
    %v408 = vld [vmem:[#allocation7 + $0x170] sm:$0xff]
    %v409 = vld [vmem:[#allocation7 + $0x178] sm:$0xff]
    %v410 = vld [vmem:[#allocation7 + $0x180] sm:$0xff]
    %v411 = vld [vmem:[#allocation7 + $0x188] sm:$0xff]
    %v412 = vld [vmem:[#allocation7 + $0x190] sm:$0xff]
    %v413 = vld [vmem:[#allocation7 + $0x198] sm:$0xff]
    %v414 = vld [vmem:[#allocation7 + $0x1a0] sm:$0xff]
    %v415 = vld [vmem:[#allocation7 + $0x1a8] sm:$0xff]
    %v416 = vld [vmem:[#allocation7 + $0x1b0] sm:$0xff]
    %v417 = vld [vmem:[#allocation7 + $0x1b8] sm:$0xff]
    %v418 = vld [vmem:[#allocation7 + $0x1c0] sm:$0xff]
    %v419 = vld [vmem:[#allocation7 + $0x1c8] sm:$0xff]
    %v420 = vld [vmem:[#allocation7 + $0x1d0] sm:$0xff]
    %v421 = vld [vmem:[#allocation7 + $0x1d8] sm:$0xff]
    %v422 = vld [vmem:[#allocation7 + $0x1e0] sm:$0xff]
    %v423 = vld [vmem:[#allocation7 + $0x1e8] sm:$0xff]
    %v424 = vld [vmem:[#allocation7 + $0x1f0] sm:$0xff]
    %v425 = vld [vmem:[#allocation7 + $0x1f8] sm:$0xff]
    %v427 = vlaneseq
    %v428 = vshrl.u32 %v427, 7
    %v429 = vsub.s32 0, %v428
    %v430 = vrot.slane %v111, %v429
    %v431 = vlaneseq
    %v432 = vshrl.u32 %v431, 7
    %v433 = vsub.s32 1, %v432
    %v434 = vrot.slane %v111, %v433
    %v501 = vunpack.c.l.b16 %v362
    %v502 = vunpack.c.h.b16 %v362
    %v503 = vunpack.c.l.b16 %v363
    %v504 = vunpack.c.h.b16 %v363
    %v505 = vunpack.c.l.b16 %v364
    %v506 = vunpack.c.h.b16 %v364
    %v507 = vunpack.c.l.b16 %v365
    %v508 = vunpack.c.h.b16 %v365
    %v509 = vunpack.c.l.b16 %v366
    %v510 = vunpack.c.h.b16 %v366
    %v511 = vunpack.c.l.b16 %v367
    %v512 = vunpack.c.h.b16 %v367
    %v513 = vunpack.c.l.b16 %v368
    %v514 = vunpack.c.h.b16 %v368
    %v515 = vunpack.c.l.b16 %v369
    %v516 = vunpack.c.h.b16 %v369
    %v517 = vunpack.c.l.b16 %v370
    %v518 = vunpack.c.h.b16 %v370
    %v519 = vunpack.c.l.b16 %v371
    %v520 = vunpack.c.h.b16 %v371
    %v521 = vunpack.c.l.b16 %v372
    %v522 = vunpack.c.h.b16 %v372
    %v523 = vunpack.c.l.b16 %v373
    %v524 = vunpack.c.h.b16 %v373
    %v525 = vunpack.c.l.b16 %v374
    %v526 = vunpack.c.h.b16 %v374
    %v527 = vunpack.c.l.b16 %v375
    %v528 = vunpack.c.h.b16 %v375
    %v529 = vunpack.c.l.b16 %v376
    %v530 = vunpack.c.h.b16 %v376
    %v531 = vunpack.c.l.b16 %v377
    %v532 = vunpack.c.h.b16 %v377
    %v533 = vunpack.c.l.b16 %v378
    %v534 = vunpack.c.h.b16 %v378
    %v535 = vunpack.c.l.b16 %v379
    %v536 = vunpack.c.h.b16 %v379
    %v537 = vunpack.c.l.b16 %v380
    %v538 = vunpack.c.h.b16 %v380
    %v539 = vunpack.c.l.b16 %v381
    %v540 = vunpack.c.h.b16 %v381
    %v541 = vunpack.c.l.b16 %v382
    %v542 = vunpack.c.h.b16 %v382
    %v543 = vunpack.c.l.b16 %v383
    %v544 = vunpack.c.h.b16 %v383
    %v545 = vunpack.c.l.b16 %v384
    %v546 = vunpack.c.h.b16 %v384
    %v547 = vunpack.c.l.b16 %v385
    %v548 = vunpack.c.h.b16 %v385
    %v549 = vunpack.c.l.b16 %v386
    %v550 = vunpack.c.h.b16 %v386
    %v551 = vunpack.c.l.b16 %v387
    %v552 = vunpack.c.h.b16 %v387
    %v553 = vunpack.c.l.b16 %v388
    %v554 = vunpack.c.h.b16 %v388
    %v555 = vunpack.c.l.b16 %v389
    %v556 = vunpack.c.h.b16 %v389
    %v557 = vunpack.c.l.b16 %v390
    %v558 = vunpack.c.h.b16 %v390
    %v559 = vunpack.c.l.b16 %v391
    %v560 = vunpack.c.h.b16 %v391
    %v561 = vunpack.c.l.b16 %v392
    %v562 = vunpack.c.h.b16 %v392
    %v563 = vunpack.c.l.b16 %v393
    %v564 = vunpack.c.h.b16 %v393
    %v565 = vunpack.c.l.b16 %v394
    %v566 = vunpack.c.h.b16 %v394
    %v567 = vunpack.c.l.b16 %v395
    %v568 = vunpack.c.h.b16 %v395
    %v569 = vunpack.c.l.b16 %v396
    %v570 = vunpack.c.h.b16 %v396
    %v571 = vunpack.c.l.b16 %v397
    %v572 = vunpack.c.h.b16 %v397
    %v573 = vunpack.c.l.b16 %v398
    %v574 = vunpack.c.h.b16 %v398
    %v575 = vunpack.c.l.b16 %v399
    %v576 = vunpack.c.h.b16 %v399
    %v577 = vunpack.c.l.b16 %v400
    %v578 = vunpack.c.h.b16 %v400
    %v579 = vunpack.c.l.b16 %v401
    %v580 = vunpack.c.h.b16 %v401
    %v581 = vunpack.c.l.b16 %v402
    %v582 = vunpack.c.h.b16 %v402
    %v583 = vunpack.c.l.b16 %v403
    %v584 = vunpack.c.h.b16 %v403
    %v585 = vunpack.c.l.b16 %v404
    %v586 = vunpack.c.h.b16 %v404
    %v587 = vunpack.c.l.b16 %v405
    %v588 = vunpack.c.h.b16 %v405
    %v589 = vunpack.c.l.b16 %v406
    %v590 = vunpack.c.h.b16 %v406
    %v591 = vunpack.c.l.b16 %v407
    %v592 = vunpack.c.h.b16 %v407
    %v593 = vunpack.c.l.b16 %v408
    %v594 = vunpack.c.h.b16 %v408
    %v595 = vunpack.c.l.b16 %v409
    %v596 = vunpack.c.h.b16 %v409
    %v597 = vunpack.c.l.b16 %v410
    %v598 = vunpack.c.h.b16 %v410
    %v599 = vunpack.c.l.b16 %v411
    %v600 = vunpack.c.h.b16 %v411
    %v601 = vunpack.c.l.b16 %v412
    %v602 = vunpack.c.h.b16 %v412
    %v603 = vunpack.c.l.b16 %v413
    %v604 = vunpack.c.h.b16 %v413
    %v605 = vunpack.c.l.b16 %v414
    %v606 = vunpack.c.h.b16 %v414
    %v607 = vunpack.c.l.b16 %v415
    %v608 = vunpack.c.h.b16 %v415
    %v609 = vunpack.c.l.b16 %v416
    %v610 = vunpack.c.h.b16 %v416
    %v611 = vunpack.c.l.b16 %v417
    %v612 = vunpack.c.h.b16 %v417
    %v613 = vunpack.c.l.b16 %v418
    %v614 = vunpack.c.h.b16 %v418
    %v615 = vunpack.c.l.b16 %v419
    %v616 = vunpack.c.h.b16 %v419
    %v617 = vunpack.c.l.b16 %v420
    %v618 = vunpack.c.h.b16 %v420
    %v619 = vunpack.c.l.b16 %v421
    %v620 = vunpack.c.h.b16 %v421
    %v621 = vunpack.c.l.b16 %v422
    %v622 = vunpack.c.h.b16 %v422
    %v623 = vunpack.c.l.b16 %v423
    %v624 = vunpack.c.h.b16 %v423
    %v625 = vunpack.c.l.b16 %v424
    %v626 = vunpack.c.h.b16 %v424
    %v627 = vunpack.c.l.b16 %v425
    %v628 = vunpack.c.h.b16 %v425
    %v629 = vpack.c.b16 %v503, %v501
    %v630 = vpack.c.b16 %v504, %v502
    %v631 = vpack.c.b16 %v507, %v505
    %v632 = vpack.c.b16 %v508, %v506
    %v633 = vpack.c.b16 %v511, %v509
    %v634 = vpack.c.b16 %v512, %v510
    %v635 = vpack.c.b16 %v515, %v513
    %v636 = vpack.c.b16 %v516, %v514
    %v637 = vpack.c.b16 %v519, %v517
    %v638 = vpack.c.b16 %v520, %v518
    %v639 = vpack.c.b16 %v523, %v521
    %v640 = vpack.c.b16 %v524, %v522
    %v641 = vpack.c.b16 %v527, %v525
    %v642 = vpack.c.b16 %v528, %v526
    %v643 = vpack.c.b16 %v531, %v529
    %v644 = vpack.c.b16 %v532, %v530
    %v645 = vpack.c.b16 %v535, %v533
    %v646 = vpack.c.b16 %v536, %v534
    %v647 = vpack.c.b16 %v539, %v537
    %v648 = vpack.c.b16 %v540, %v538
    %v649 = vpack.c.b16 %v543, %v541
    %v650 = vpack.c.b16 %v544, %v542
    %v651 = vpack.c.b16 %v547, %v545
    %v652 = vpack.c.b16 %v548, %v546
    %v653 = vpack.c.b16 %v551, %v549
    %v654 = vpack.c.b16 %v552, %v550
    %v655 = vpack.c.b16 %v555, %v553
    %v656 = vpack.c.b16 %v556, %v554
    %v657 = vpack.c.b16 %v559, %v557
    %v658 = vpack.c.b16 %v560, %v558
    %v659 = vpack.c.b16 %v563, %v561
    %v660 = vpack.c.b16 %v564, %v562
    %v661 = vpack.c.b16 %v567, %v565
    %v662 = vpack.c.b16 %v568, %v566
    %v663 = vpack.c.b16 %v571, %v569
    %v664 = vpack.c.b16 %v572, %v570
    %v665 = vpack.c.b16 %v575, %v573
    %v666 = vpack.c.b16 %v576, %v574
    %v667 = vpack.c.b16 %v579, %v577
    %v668 = vpack.c.b16 %v580, %v578
    %v669 = vpack.c.b16 %v583, %v581
    %v670 = vpack.c.b16 %v584, %v582
    %v671 = vpack.c.b16 %v587, %v585
    %v672 = vpack.c.b16 %v588, %v586
    %v673 = vpack.c.b16 %v591, %v589
    %v674 = vpack.c.b16 %v592, %v590
    %v675 = vpack.c.b16 %v595, %v593
    %v676 = vpack.c.b16 %v596, %v594
    %v677 = vpack.c.b16 %v599, %v597
    %v678 = vpack.c.b16 %v600, %v598
    %v679 = vpack.c.b16 %v603, %v601
    %v680 = vpack.c.b16 %v604, %v602
    %v681 = vpack.c.b16 %v607, %v605
    %v682 = vpack.c.b16 %v608, %v606
    %v683 = vpack.c.b16 %v611, %v609
    %v684 = vpack.c.b16 %v612, %v610
    %v685 = vpack.c.b16 %v615, %v613
    %v686 = vpack.c.b16 %v616, %v614
    %v687 = vpack.c.b16 %v619, %v617
    %v688 = vpack.c.b16 %v620, %v618
    %v689 = vpack.c.b16 %v623, %v621
    %v690 = vpack.c.b16 %v624, %v622
    %v691 = vpack.c.b16 %v627, %v625
    %v692 = vpack.c.b16 %v628, %v626
    %757 = vmatprep.subr.bf16.mxu0 %v630
    %758 = vmatpush1.bf16.msra.mxu0 %v629
    %759 = vmatprep.subr.bf16.mxu0 %v632
    %760 = vmatpush1.bf16.msra.mxu0 %v631
    %761 = vmatprep.subr.bf16.mxu0 %v634
    %762 = vmatpush1.bf16.msra.mxu0 %v633
    %763 = vmatprep.subr.bf16.mxu0 %v636
    %764 = vmatpush1.bf16.msra.mxu0 %v635
    %765 = vmatprep.subr.bf16.mxu0 %v638
    %766 = vmatpush1.bf16.msra.mxu0 %v637
    %767 = vmatprep.subr.bf16.mxu0 %v640
    %768 = vmatpush1.bf16.msra.mxu0 %v639
    %769 = vmatprep.subr.bf16.mxu0 %v642
    %770 = vmatpush1.bf16.msra.mxu0 %v641
    %771 = vmatprep.subr.bf16.mxu0 %v644
    %772 = vmatpush1.bf16.msra.mxu0 %v643
    %773 = vmatprep.subr.bf16.mxu0 %v646
    %774 = vmatpush1.bf16.msra.mxu0 %v645
    %775 = vmatprep.subr.bf16.mxu0 %v648
    %776 = vmatpush1.bf16.msra.mxu0 %v647
    %777 = vmatprep.subr.bf16.mxu0 %v650
    %778 = vmatpush1.bf16.msra.mxu0 %v649
    %779 = vmatprep.subr.bf16.mxu0 %v652
    %780 = vmatpush1.bf16.msra.mxu0 %v651
    %781 = vmatprep.subr.bf16.mxu0 %v654
    %782 = vmatpush1.bf16.msra.mxu0 %v653
    %783 = vmatprep.subr.bf16.mxu0 %v656
    %784 = vmatpush1.bf16.msra.mxu0 %v655
    %785 = vmatprep.subr.bf16.mxu0 %v658
    %786 = vmatpush1.bf16.msra.mxu0 %v657
    %787 = vmatprep.subr.bf16.mxu0 %v660
    %788 = vmatpush1.bf16.msra.mxu0 %v659
    %789 = vmatprep.mubr.bf16.mxu0 %v359
    %790 = vmatmul.mubr.bf16.gmra.mrb[0].mxu0 %v358
    %v791 = vpop.f32.mrb[0].mxu0
    %v792 = vadd.f32 %v430, %v791
    %v793 = vpop.f32.mrb[0].mxu0
    %v794 = vadd.f32 %v434, %v793
    %v795 = vpop.f32.mrb[0].mxu0
    %v796 = vpop.f32.mrb[0].mxu0
    %797 = vdwg.mxu0
    %798 = vmatprep.subr.bf16.mxu0 %v662
    %799 = vmatpush1.bf16.msra.mxu0 %v661
    %800 = vmatprep.subr.bf16.mxu0 %v664
    %801 = vmatpush1.bf16.msra.mxu0 %v663
    %802 = vmatprep.subr.bf16.mxu0 %v666
    %803 = vmatpush1.bf16.msra.mxu0 %v665
    %804 = vmatprep.subr.bf16.mxu0 %v668
    %805 = vmatpush1.bf16.msra.mxu0 %v667
    %806 = vmatprep.subr.bf16.mxu0 %v670
    %807 = vmatpush1.bf16.msra.mxu0 %v669
    %808 = vmatprep.subr.bf16.mxu0 %v672
    %809 = vmatpush1.bf16.msra.mxu0 %v671
    %810 = vmatprep.subr.bf16.mxu0 %v674
    %811 = vmatpush1.bf16.msra.mxu0 %v673
    %812 = vmatprep.subr.bf16.mxu0 %v676
    %813 = vmatpush1.bf16.msra.mxu0 %v675
    %814 = vmatprep.subr.bf16.mxu0 %v678
    %815 = vmatpush1.bf16.msra.mxu0 %v677
    %816 = vmatprep.subr.bf16.mxu0 %v680
    %817 = vmatpush1.bf16.msra.mxu0 %v679
    %818 = vmatprep.subr.bf16.mxu0 %v682
    %819 = vmatpush1.bf16.msra.mxu0 %v681
    %820 = vmatprep.subr.bf16.mxu0 %v684
    %821 = vmatpush1.bf16.msra.mxu0 %v683
    %822 = vmatprep.subr.bf16.mxu0 %v686
    %823 = vmatpush1.bf16.msra.mxu0 %v685
    %824 = vmatprep.subr.bf16.mxu0 %v688
    %825 = vmatpush1.bf16.msra.mxu0 %v687
    %826 = vmatprep.subr.bf16.mxu0 %v690
    %827 = vmatpush1.bf16.msra.mxu0 %v689
    %828 = vmatprep.subr.bf16.mxu0 %v692
    %829 = vmatpush1.bf16.msra.mxu0 %v691
    %830 = vmatprep.mubr.bf16.mxu0 %v361
    %831 = vmatmul.mubr.bf16.gmra.mrb[0].mxu0 %v360
    %v832 = vpop.f32.mrb[0].mxu0
    %v833 = vadd.f32 %v792, %v832
    %v834 = vpop.f32.mrb[0].mxu0
    %v835 = vadd.f32 %v794, %v834
    %v836 = vpop.f32.mrb[0].mxu0
    %v837 = vpop.f32.mrb[0].mxu0
    %838 = vdwg.mxu0
    %v839 = vtanh.pop %v833
    %v840 = vtanh.pop %v835
    %v841 = vadd.f32 %v839, %v840
    %842 = vadd.xlane.f32.xlu0 %v841
    %v843 = vpop.xlane.xlu0 %842
    %v844 = vmul.f32 %v839, %v839
    %v845 = vmul.f32 %v840, %v840
    %v846 = vadd.f32 %v844, %v845
    %847 = vadd.xlane.f32.xlu0 %v846
    %v848 = vpop.xlane.xlu0 %847
    %v849 = vmul.f32 %v843, 0.00390625
    %v850 = vmul.f32 %v848, 0.00390625
    %v851 = vmul.f32 %v849, %v849
    %v852 = vsub.f32 %v850, %v851
    %v853 = vsub.f32 %v839, %v849
    %v854 = vsub.f32 %v840, %v849
    %v855 = vadd.f32 %v852, 1e-05
    %v856 = vrsqrt.pop %v855
    %v857 = vmul.f32 %v853, %v856
    %v858 = vmul.f32 %v854, %v856
    %v860 = vlaneseq
    %v861 = vshrl.u32 %v860, 7
    %v862 = vsub.s32 0, %v861
    %v863 = vrot.slane %v113, %v862
    %v864 = vlaneseq
    %v865 = vshrl.u32 %v864, 7
    %v866 = vsub.s32 1, %v865
    %v867 = vrot.slane %v113, %v866
    %v870 = vmul.f32 %v857, %v863
    %v871 = vmul.f32 %v858, %v867
    %v873 = vlaneseq
    %v874 = vshrl.u32 %v873, 7
    %v875 = vsub.s32 0, %v874
    %v876 = vrot.slane %v115, %v875
    %v877 = vlaneseq
    %v878 = vshrl.u32 %v877, 7
    %v879 = vsub.s32 1, %v878
    %v880 = vrot.slane %v115, %v879
    %v883 = vadd.f32 %v870, %v876
    %v884 = vadd.f32 %v871, %v880
    %v885 = vpack.c.bf16 %v883, %v883
    %v886 = vpack.c.bf16 %v884, %v884
    %v887 = vld [vmem:[#allocation8] sm:$0xf]
    %v888 = vld [vmem:[#allocation8 + $0x4] sm:$0xf]
    %v889 = vld [vmem:[#allocation8 + $0x8] sm:$0xf]
    %v890 = vld [vmem:[#allocation8 + $0xc] sm:$0xf]
    %v891 = vld [vmem:[#allocation8 + $0x10] sm:$0xf]
    %v892 = vld [vmem:[#allocation8 + $0x14] sm:$0xf]
    %v893 = vld [vmem:[#allocation8 + $0x18] sm:$0xf]
    %v894 = vld [vmem:[#allocation8 + $0x1c] sm:$0xf]
    %v895 = vld [vmem:[#allocation8 + $0x20] sm:$0xf]
    %v896 = vld [vmem:[#allocation8 + $0x24] sm:$0xf]
    %v897 = vld [vmem:[#allocation8 + $0x28] sm:$0xf]
    %v898 = vld [vmem:[#allocation8 + $0x2c] sm:$0xf]
    %v899 = vld [vmem:[#allocation8 + $0x30] sm:$0xf]
    %v900 = vld [vmem:[#allocation8 + $0x34] sm:$0xf]
    %v901 = vld [vmem:[#allocation8 + $0x38] sm:$0xf]
    %v902 = vld [vmem:[#allocation8 + $0x3c] sm:$0xf]
    %v903 = vld [vmem:[#allocation8 + $0x40] sm:$0xf]
    %v904 = vld [vmem:[#allocation8 + $0x44] sm:$0xf]
    %v905 = vld [vmem:[#allocation8 + $0x48] sm:$0xf]
    %v906 = vld [vmem:[#allocation8 + $0x4c] sm:$0xf]
    %v907 = vld [vmem:[#allocation8 + $0x50] sm:$0xf]
    %v908 = vld [vmem:[#allocation8 + $0x54] sm:$0xf]
    %v909 = vld [vmem:[#allocation8 + $0x58] sm:$0xf]
    %v910 = vld [vmem:[#allocation8 + $0x5c] sm:$0xf]
    %v911 = vld [vmem:[#allocation8 + $0x60] sm:$0xf]
    %v912 = vld [vmem:[#allocation8 + $0x64] sm:$0xf]
    %v913 = vld [vmem:[#allocation8 + $0x68] sm:$0xf]
    %v914 = vld [vmem:[#allocation8 + $0x6c] sm:$0xf]
    %v915 = vld [vmem:[#allocation8 + $0x70] sm:$0xf]
    %v916 = vld [vmem:[#allocation8 + $0x74] sm:$0xf]
    %v917 = vld [vmem:[#allocation8 + $0x78] sm:$0xf]
    %v918 = vld [vmem:[#allocation8 + $0x7c] sm:$0xf]
    %v951 = vunpack.c.l.b16 %v887
    %v952 = vunpack.c.l.b16 %v888
    %v953 = vunpack.c.l.b16 %v889
    %v954 = vunpack.c.l.b16 %v890
    %v955 = vunpack.c.l.b16 %v891
    %v956 = vunpack.c.l.b16 %v892
    %v957 = vunpack.c.l.b16 %v893
    %v958 = vunpack.c.l.b16 %v894
    %v959 = vunpack.c.l.b16 %v895
    %v960 = vunpack.c.l.b16 %v896
    %v961 = vunpack.c.l.b16 %v897
    %v962 = vunpack.c.l.b16 %v898
    %v963 = vunpack.c.l.b16 %v899
    %v964 = vunpack.c.l.b16 %v900
    %v965 = vunpack.c.l.b16 %v901
    %v966 = vunpack.c.l.b16 %v902
    %v967 = vunpack.c.l.b16 %v903
    %v968 = vunpack.c.l.b16 %v904
    %v969 = vunpack.c.l.b16 %v905
    %v970 = vunpack.c.l.b16 %v906
    %v971 = vunpack.c.l.b16 %v907
    %v972 = vunpack.c.l.b16 %v908
    %v973 = vunpack.c.l.b16 %v909
    %v974 = vunpack.c.l.b16 %v910
    %v975 = vunpack.c.l.b16 %v911
    %v976 = vunpack.c.l.b16 %v912
    %v977 = vunpack.c.l.b16 %v913
    %v978 = vunpack.c.l.b16 %v914
    %v979 = vunpack.c.l.b16 %v915
    %v980 = vunpack.c.l.b16 %v916
    %v981 = vunpack.c.l.b16 %v917
    %v982 = vunpack.c.l.b16 %v918
    %v983 = vpack.c.b16 %v952, %v951
    %v984 = vpack.c.b16 %v954, %v953
    %v985 = vpack.c.b16 %v956, %v955
    %v986 = vpack.c.b16 %v958, %v957
    %v987 = vpack.c.b16 %v960, %v959
    %v988 = vpack.c.b16 %v962, %v961
    %v989 = vpack.c.b16 %v964, %v963
    %v990 = vpack.c.b16 %v966, %v965
    %v991 = vpack.c.b16 %v968, %v967
    %v992 = vpack.c.b16 %v970, %v969
    %v993 = vpack.c.b16 %v972, %v971
    %v994 = vpack.c.b16 %v974, %v973
    %v995 = vpack.c.b16 %v976, %v975
    %v996 = vpack.c.b16 %v978, %v977
    %v997 = vpack.c.b16 %v980, %v979
    %v998 = vpack.c.b16 %v982, %v981
    %1015 = vmatprep.subr.bf16.mxu0 0
    %1016 = vmatpush1.bf16.msra.mxu0 %v983
    %1017 = vmatprep.subr.bf16.mxu0 0
    %1018 = vmatpush1.bf16.msra.mxu0 %v984
    %1019 = vmatprep.subr.bf16.mxu0 0
    %1020 = vmatpush1.bf16.msra.mxu0 %v985
    %1021 = vmatprep.subr.bf16.mxu0 0
    %1022 = vmatpush1.bf16.msra.mxu0 %v986
    %1023 = vmatprep.subr.bf16.mxu0 0
    %1024 = vmatpush1.bf16.msra.mxu0 %v987
    %1025 = vmatprep.subr.bf16.mxu0 0
    %1026 = vmatpush1.bf16.msra.mxu0 %v988
    %1027 = vmatprep.subr.bf16.mxu0 0
    %1028 = vmatpush1.bf16.msra.mxu0 %v989
    %1029 = vmatprep.subr.bf16.mxu0 0
    %1030 = vmatpush1.bf16.msra.mxu0 %v990
    %1031 = vmatprep.subr.bf16.mxu0 0
    %1032 = vmatpush1.bf16.msra.mxu0 %v991
    %1033 = vmatprep.subr.bf16.mxu0 0
    %1034 = vmatpush1.bf16.msra.mxu0 %v992
    %1035 = vmatprep.subr.bf16.mxu0 0
    %1036 = vmatpush1.bf16.msra.mxu0 %v993
    %1037 = vmatprep.subr.bf16.mxu0 0
    %1038 = vmatpush1.bf16.msra.mxu0 %v994
    %1039 = vmatprep.subr.bf16.mxu0 0
    %1040 = vmatpush1.bf16.msra.mxu0 %v995
    %1041 = vmatprep.subr.bf16.mxu0 0
    %1042 = vmatpush1.bf16.msra.mxu0 %v996
    %1043 = vmatprep.subr.bf16.mxu0 0
    %1044 = vmatpush1.bf16.msra.mxu0 %v997
    %1045 = vmatprep.subr.bf16.mxu0 0
    %1046 = vmatpush1.bf16.msra.mxu0 %v998
    %1047 = vmatprep.mubr.bf16.mxu0 %v886
    %1048 = vmatmul.mubr.bf16.gmra.mrb[0].mxu0 %v885
    %v1049 = vpop.f32.mrb[0].mxu0
    %v1050 = vadd.f32 %v116, %v1049
    %v1051 = vpop.f32.mrb[0].mxu0
    %v1052 = vpop.f32.mrb[0].mxu0
    %v1053 = vpop.f32.mrb[0].mxu0
    %1054 = vdwg.mxu0
    %v1055 = vtanh.pop %v1050
    %1056 = vadd.xlane.f32.xlu0 %v1055
    %v1057 = vpop.xlane.xlu0 %1056
    %v1058 = vmul.f32 %v1055, %v1055
    %1059 = vadd.xlane.f32.xlu0 %v1058
    %v1060 = vpop.xlane.xlu0 %1059
    %v1061 = vmul.f32 %v1057, 0.0078125
    %v1062 = vmul.f32 %v1060, 0.0078125
    %v1063 = vmul.f32 %v1061, %v1061
    %v1064 = vsub.f32 %v1062, %v1063
    %v1065 = vsub.f32 %v1055, %v1061
    %v1066 = vadd.f32 %v1064, 1e-05
    %v1067 = vrsqrt.pop %v1066
    %v1068 = vmul.f32 %v1065, %v1067
    %v1069 = vmul.f32 %v1068, %v117
    %v1070 = vadd.f32 %v1069, %v118
    %v1071 = vpack.c.bf16 %v1070, %v1070
    %v1072 = vld [vmem:[#allocation10] sm:$0xf]
    %v1073 = vld [vmem:[#allocation10 + $0x4] sm:$0xf]
    %v1074 = vld [vmem:[#allocation10 + $0x8] sm:$0xf]
    %v1075 = vld [vmem:[#allocation10 + $0xc] sm:$0xf]
    %v1076 = vld [vmem:[#allocation10 + $0x10] sm:$0xf]
    %v1077 = vld [vmem:[#allocation10 + $0x14] sm:$0xf]
    %v1078 = vld [vmem:[#allocation10 + $0x18] sm:$0xf]
    %v1079 = vld [vmem:[#allocation10 + $0x1c] sm:$0xf]
    %v1080 = vld [vmem:[#allocation10 + $0x20] sm:$0xf]
    %v1081 = vld [vmem:[#allocation10 + $0x24] sm:$0xf]
    %v1082 = vld [vmem:[#allocation10 + $0x28] sm:$0xf]
    %v1083 = vld [vmem:[#allocation10 + $0x2c] sm:$0xf]
    %v1084 = vld [vmem:[#allocation10 + $0x30] sm:$0xf]
    %v1085 = vld [vmem:[#allocation10 + $0x34] sm:$0xf]
    %v1086 = vld [vmem:[#allocation10 + $0x38] sm:$0xf]
    %v1087 = vld [vmem:[#allocation10 + $0x3c] sm:$0xf]
    %v1104 = vunpack.c.l.b16 %v1072
    %v1105 = vunpack.c.l.b16 %v1073
    %v1106 = vunpack.c.l.b16 %v1074
    %v1107 = vunpack.c.l.b16 %v1075
    %v1108 = vunpack.c.l.b16 %v1076
    %v1109 = vunpack.c.l.b16 %v1077
    %v1110 = vunpack.c.l.b16 %v1078
    %v1111 = vunpack.c.l.b16 %v1079
    %v1112 = vunpack.c.l.b16 %v1080
    %v1113 = vunpack.c.l.b16 %v1081
    %v1114 = vunpack.c.l.b16 %v1082
    %v1115 = vunpack.c.l.b16 %v1083
    %v1116 = vunpack.c.l.b16 %v1084
    %v1117 = vunpack.c.l.b16 %v1085
    %v1118 = vunpack.c.l.b16 %v1086
    %v1119 = vunpack.c.l.b16 %v1087
    %v1120 = vpack.c.b16 %v1105, %v1104
    %v1121 = vpack.c.b16 %v1107, %v1106
    %v1122 = vpack.c.b16 %v1109, %v1108
    %v1123 = vpack.c.b16 %v1111, %v1110
    %v1124 = vpack.c.b16 %v1113, %v1112
    %v1125 = vpack.c.b16 %v1115, %v1114
    %v1126 = vpack.c.b16 %v1117, %v1116
    %v1127 = vpack.c.b16 %v1119, %v1118
    %1136 = vmatprep.subr.bf16.mxu0 0
    %1137 = vmatpush1.bf16.msra.mxu0 %v1120
    %1138 = vmatprep.subr.bf16.mxu0 0
    %1139 = vmatpush1.bf16.msra.mxu0 %v1121
    %1140 = vmatprep.subr.bf16.mxu0 0
    %1141 = vmatpush1.bf16.msra.mxu0 %v1122
    %1142 = vmatprep.subr.bf16.mxu0 0
    %1143 = vmatpush1.bf16.msra.mxu0 %v1123
    %1144 = vmatprep.subr.bf16.mxu0 0
    %1145 = vmatpush1.bf16.msra.mxu0 %v1124
    %1146 = vmatprep.subr.bf16.mxu0 0
    %1147 = vmatpush1.bf16.msra.mxu0 %v1125
    %1148 = vmatprep.subr.bf16.mxu0 0
    %1149 = vmatpush1.bf16.msra.mxu0 %v1126
    %1150 = vmatprep.subr.bf16.mxu0 0
    %1151 = vmatpush1.bf16.msra.mxu0 %v1127
    %1152 = vmatprep.subr.bf16.mxu0 0
    %1153 = vmatpush1.bf16.msra.mxu0 0
    %1154 = vmatprep.subr.bf16.mxu0 0
    %1155 = vmatpush1.bf16.msra.mxu0 0
    %1156 = vmatprep.subr.bf16.mxu0 0
    %1157 = vmatpush1.bf16.msra.mxu0 0
    %1158 = vmatprep.subr.bf16.mxu0 0
    %1159 = vmatpush1.bf16.msra.mxu0 0
    %1160 = vmatprep.subr.bf16.mxu0 0
    %1161 = vmatpush1.bf16.msra.mxu0 0
    %1162 = vmatprep.subr.bf16.mxu0 0
    %1163 = vmatpush1.bf16.msra.mxu0 0
    %1164 = vmatprep.subr.bf16.mxu0 0
    %1165 = vmatpush1.bf16.msra.mxu0 0
    %1166 = vmatprep.subr.bf16.mxu0 0
    %1167 = vmatpush1.bf16.msra.mxu0 0
    %1168 = vmatprep.mubr.bf16.mxu0 0
    %1169 = vmatmul.mubr.bf16.gmra.mrb[0].mxu0 %v1071
    %v1170 = vpop.f32.mrb[0].mxu0
    %v1171 = vadd.f32 %v119, %v1170
    %v1172 = vpop.f32.mrb[0].mxu0
    %v1173 = vpop.f32.mrb[0].mxu0
    %v1174 = vpop.f32.mrb[0].mxu0
    %1175 = vdwg.mxu0
    %1176 = vst [vmem:[#allocation13] sm:$0xff] %v1171
    // Predicated region
    $region50: #{tpu_custom_call.1} parent=1 // pred_check
      _
    $region51: #{tpu_custom_call.1} parent=1 // pred_check_branch
      %1178 = sbr.rel (0) target = $region53
    $region52: #{tpu_custom_call.1} parent=1 // pred_region
      %s1180 = ssub.s32 128, 128
      %1181 = vsyncadd [#allocation4], %s1180
      %s1183 = sshll.u32 [#allocation13], 4
      %s1184 = int_to_ptr.vmem [resolvable:$true] %s1183
      %1186 = dma.vmem_to_hbm [thread:$0]  %s1184, 128, %s6, [#allocation4]
    $region53: #{tpu_custom_call.1} parent=1 // pred_fallthru
      _
    // Predicated region
    $region54: #{tpu_custom_call.1} parent=1 // pred_check
      _
    $region55: #{tpu_custom_call.1} parent=1 // pred_check_branch
      %1188 = sbr.rel (0) target = $region57
    $region56: #{tpu_custom_call.1} parent=1 // pred_region
      %1189 = dma.done [#allocation4], 128
    $region57: #{tpu_custom_call.1} parent=1 // pred_fallthru
      _
    %1190 = vsyncpa [#allocation3], 1
    %1191 = vsyncpa [#allocation6], 1
    %1192 = vsyncpa [#allocation9], 1
    %1193 = vsyncpa [#allocation12], 1
    %1194 = vsyncpa [#allocation4], 1

</llo_original>
